<compile_context>
chip_gen: v7x
topology: tpu7x:2x2x1
jax: 0.10.0
libtpu: 0.0.40
codegen_flags: <defaults>
</compile_context>

<pallas_src>
import math

import jax
import jax.numpy as jnp
from jax.experimental import pallas as pl
from jax.experimental.pallas import tpu as pltpu


def _round_up(n, m):
    return ((n + m - 1) // m) * m


def _vmem_budget_bytes(frac=0.75, cap_bytes=96 * 1024 * 1024):
    """Per-generation VMEM budget for tile sizing.

    ~96 MiB on v5e/v6e (128 MiB physical VMEM), ~48 MiB on v7x (64 MiB per
    TensorCore).  The narrow guard covers only the hardware query itself
    (older jax / emulated backends) -- it never hides kernel lowering errors.
    """
    vmem = 64 * 1024 * 1024  # conservative default: v7x per-TC VMEM
    try:
        info = pltpu.get_tpu_info()
        vmem = int(getattr(info, "vmem_capacity_bytes", vmem) or vmem)
    except Exception:
        pass
    return min(int(frac * vmem), cap_bytes)


def _sine_layer_kernel(x_ref, w_ref, b_ref, o_ref):
    # MXU matmul on bf16 operands with f32 accumulation; bias add on the VPU
    # and sin on the EUP stay in f32 (v5e has no bf16 VPU/EUP).
    xv = x_ref[...]
    wv = w_ref[...]
    z = jnp.dot(xv.astype(wv.dtype), wv, preferred_element_type=jnp.float32)
    z = z + b_ref[...]                     # (tm, tn) + (1, tn) broadcast
    o_ref[...] = jnp.sin(z).astype(o_ref.dtype)


def prepare_sine_params(w, b, omega_0, *, param_dtype=jnp.bfloat16):
    """One-time parameter preparation (module-construction time).

    * Folds omega_0 into the parameters: sin(omega_0*(x@w+b)) == sin(x@w'+b')
      with w' = omega_0*w, b' = omega_0*b (exact).
    * Pads the output dimension to a multiple of 128 so kernel output stores
      are lane-dense -- a one-time cost here instead of a per-call jnp.pad.
    * Casts the weight to bf16 (native MXU rate on v5e/v6e/v7x, half the
      HBM/VMEM bytes); the bias stays f32 (added in f32 on the VPU).

    w: (in_features, out_features)  [transpose of torch.nn.Linear.weight]
    Returns (w_prepped, b_prepped, out_features).
    """
    K, N = w.shape
    s = jnp.float32(omega_0)
    w = jnp.asarray(w, jnp.float32) * s
    b = jnp.asarray(b, jnp.float32).reshape(1, N) * s
    Np = _round_up(N, 128)
    if Np != N:
        w = jnp.pad(w, ((0, 0), (0, Np - N)))
        b = jnp.pad(b, ((0, 0), (0, Np - N)))
    return w.astype(param_dtype), b, N


def _choose_tiles(B, K, Np, x_bytes, w_bytes, budget, tm_req):
    def step_bytes(t_m, t_n):
        # Pessimistic: assume every block is double-buffered.
        return 2 * (t_m * K * x_bytes      # x tile
                    + K * t_n * w_bytes    # weight tile
                    + t_n * 4              # bias tile
                    + t_m * t_n * 4)       # f32 output tile

    # Column tile: keep the weight fully resident when it fits the budget even
    # at the minimum row tile; otherwise split N (v7x has only 64 MiB VMEM/TC).
    tn = Np
    while tn > 128 and step_bytes(128, tn) > budget:
        half = tn // 2
        if half % 128 != 0 or Np % half != 0:
            # TODO(synk): smarter column split for huge non-power-of-two Np.
            break
        tn = half

    # Row tile: big tiles amortize the ~0.35us/step pipeline overhead; snap to
    # multiples of 128 so MXU LHS passes and sublane loads/stores stay dense.
    if B < 128:
        tm = _round_up(B, 8)
    else:
        tm = min(_round_up(tm_req, 128), _round_up(B, 128))
        if B >= 256:
            # v7x has 2 TensorCores and the batch axis is the parallel axis:
            # keep at least 2 row steps so both cores get work.
            tm = min(tm, _round_up(-(-B // 2), 128))
        while tm > 128 and step_bytes(tm, tn) > budget:
            tm = max(128, _round_up(tm // 2, 128))
    return tm, tn


def sine_layer(x, w, b, out_features=None, *, tm=512):
    """SIREN sine layer: sin(x @ w + b) with omega_0 pre-folded into (w, b).

    x: (B, K) f32 or bf16.
    w: (K, Np) bf16 (or f32), Np a multiple of 128 -- from prepare_sine_params.
    b: (1, Np) f32.
    Returns (B, out_features) f32.
    """
    B, K = x.shape
    Kw, Np = w.shape
    assert K == Kw, (K, Kw)
    assert Np % 128 == 0, "use prepare_sine_params() to pad the parameters"
    b = b.reshape(1, Np)
    if out_features is None:
        out_features = Np

    budget = _vmem_budget_bytes()
    tm_eff, tn_eff = _choose_tiles(B, K, Np, x.dtype.itemsize,
                                   w.dtype.itemsize, budget, tm)

    # Pad the batch only when the row tile does not divide it.
    Bp = _round_up(B, tm_eff)
    if Bp != B:
        x = jnp.pad(x, ((0, Bp - B), (0, 0)))
    grid = (Bp // tm_eff, Np // tn_eff)

    cost = pl.CostEstimate(
        flops=2 * Bp * K * Np,
        transcendentals=Bp * Np,
        bytes_accessed=(Bp * K * x.dtype.itemsize + K * Np * w.dtype.itemsize
                        + Np * 4 + Bp * Np * 4),
    )

    out = pl.pallas_call(
        _sine_layer_kernel,
        out_shape=jax.ShapeDtypeStruct((Bp, Np), jnp.float32),
        grid_spec=pltpu.PrefetchScalarGridSpec(
            num_scalar_prefetch=0,
            grid=grid,
            in_specs=[
                pl.BlockSpec((tm_eff, K), lambda i, j: (i, 0)),   # x row tile
                pl.BlockSpec((K, tn_eff), lambda i, j: (0, j)),   # weight cols
                pl.BlockSpec((1, tn_eff), lambda i, j: (0, j)),   # bias cols
            ],
            out_specs=pl.BlockSpec((tm_eff, tn_eff), lambda i, j: (i, j)),
        ),
        compiler_params=pltpu.CompilerParams(
            dimension_semantics=("parallel", "parallel"),
            vmem_limit_bytes=budget,
        ),
        cost_estimate=cost,
    )(x, w, b)

    if Bp != B or Np != out_features:
        out = out[:B, :out_features]
    return out


def init_sine_layer_params(key, in_features, out_features,
                           is_first=False, omega_0=30.0):
    """SIREN init matching SineLayer.init_weights().

    Weight stored transposed relative to torch.nn.Linear: (in, out)."""
    wkey, bkey = jax.random.split(key)
    if is_first:
        bound = 1.0 / in_features
    else:
        bound = math.sqrt(6.0 / in_features) / omega_0
    w = jax.random.uniform(wkey, (in_features, out_features),
                           dtype=jnp.float32, minval=-bound, maxval=bound)
    # torch's default Linear bias init: U(-1/sqrt(in), 1/sqrt(in))
    b_bound = 1.0 / math.sqrt(in_features)
    b = jax.random.uniform(bkey, (1, out_features),
                           dtype=jnp.float32, minval=-b_bound, maxval=b_bound)
    return w, b


if __name__ == "__main__":
    key = jax.random.PRNGKey(0)
    xkey, pkey = jax.random.split(key)

    # Small shapes consistent with the module (a first SIREN layer).
    B, IN_F, OUT_F = 128, 32, 64
    OMEGA_0 = 30.0
    IS_FIRST = True

    x = jax.random.uniform(xkey, (B, IN_F), dtype=jnp.float32,
                           minval=-1.0, maxval=1.0)
    w, b = init_sine_layer_params(pkey, IN_F, OUT_F,
                                  is_first=IS_FIRST, omega_0=OMEGA_0)
    # One-time "module construction" work: fold omega_0, pad N, cast to bf16.
    w_p, b_p, n_out = prepare_sine_params(w, b, OMEGA_0)

    out = jax.block_until_ready(sine_layer(x, w_p, b_p, n_out))
    assert out.shape == (B, OUT_F)

    # Reference on the same precision path (bf16 MXU operands, f32 accumulate,
    # f32 bias add + sin) so the tolerance reflects kernel correctness rather
    # than the intentional bf16 operand quantization (the omega_0 folding
    # itself is exact).
    z_ref = jnp.dot(x.astype(w_p.dtype), w_p[:, :n_out],
                    preferred_element_type=jnp.float32) + b_p[:, :n_out]
    ref = jnp.sin(z_ref)
    assert jnp.allclose(out, ref, atol=1e-3, rtol=1e-3), "mismatch vs reference"

    print("KERNEL_OK")
</pallas_src>

<mosaic_0001>
module attributes {stable_mosaic.version = 11 : i64} {
  func.func @_sine_layer_kernel(%arg0: i32, %arg1: i32, %arg2: memref<128x32xf32, #tpu.memory_space<vmem>>, %arg3: memref<32x128xbf16, #tpu.memory_space<vmem>>, %arg4: memref<1x128xf32, #tpu.memory_space<vmem>>, %arg5: memref<128x128xf32, #tpu.memory_space<vmem>>) attributes {dimension_semantics = [#tpu.dimension_semantics<parallel>, #tpu.dimension_semantics<parallel>], iteration_bounds = array<i64: 1, 1>, scalar_prefetch = 0 : i64, scratch_operands = 0 : i64, tpu.core_type = #tpu.core_type<tc>, window_params = [{transform_indices = @transform_0, window_bounds = array<i64: 128, 32>}, {transform_indices = @transform_1, window_bounds = array<i64: 32, 128>}, {transform_indices = @transform_2, window_bounds = array<i64: 1, 128>}, {transform_indices = @transform_3, window_bounds = array<i64: 128, 128>}]} {
    %c0 = arith.constant 0 : index
    %c0_0 = arith.constant 0 : index
    %0 = vector.load %arg2[%c0, %c0_0] : memref<128x32xf32, #tpu.memory_space<vmem>>, vector<128x32xf32>
    %c0_1 = arith.constant 0 : index
    %c0_2 = arith.constant 0 : index
    %1 = vector.load %arg3[%c0_1, %c0_2] : memref<32x128xbf16, #tpu.memory_space<vmem>>, vector<32x128xbf16>
    %2 = arith.truncf %0 : vector<128x32xf32> to vector<128x32xbf16>
    %cst = arith.constant dense<0.000000e+00> : vector<128x128xf32>
    %3 = tpu.matmul %2, %1, %cst {dimension_numbers = #tpu.dot_dimension_numbers<[1], [0], [0], [1], [0, 0, 1, 1], [], []>} : vector<128x32xbf16>, vector<32x128xbf16>, vector<128x128xf32> -> vector<128x128xf32>
    %c0_3 = arith.constant 0 : index
    %c0_4 = arith.constant 0 : index
    %4 = vector.load %arg4[%c0_3, %c0_4] : memref<1x128xf32, #tpu.memory_space<vmem>>, vector<1x128xf32>
    %5 = vector.broadcast %4 : vector<1x128xf32> to vector<128x128xf32>
    %6 = arith.addf %3, %5 : vector<128x128xf32>
    %7 = math.sin %6 : vector<128x128xf32>
    %c0_5 = arith.constant 0 : index
    %c0_6 = arith.constant 0 : index
    %8 = vector.load %arg5[%c0_5, %c0_6] : memref<128x128xf32, #tpu.memory_space<vmem>>, vector<128x128xf32>
    tpu.vector_store %arg5[%c0_5, %c0_6], %7 {strides = array<i32>} : memref<128x128xf32, #tpu.memory_space<vmem>>, vector<128x128xf32>,
    return
  }
  func.func @transform_0(%arg0: i32, %arg1: i32) -> (i32, i32) {
    %c0_i32 = arith.constant 0 : i32
    %c0_i32_0 = arith.constant 0 : i32
    return %arg0, %c0_i32 : i32, i32
  }
  func.func @transform_1(%arg0: i32, %arg1: i32) -> (i32, i32) {
    %c0_i32 = arith.constant 0 : i32
    %c0_i32_0 = arith.constant 0 : i32
    return %c0_i32, %arg1 : i32, i32
  }
  func.func @transform_2(%arg0: i32, %arg1: i32) -> (i32, i32) {
    %c0_i32 = arith.constant 0 : i32
    %c0_i32_0 = arith.constant 0 : i32
    return %c0_i32, %arg1 : i32, i32
  }
  func.func @transform_3(%arg0: i32, %arg1: i32) -> (i32, i32) {
    %c0_i32 = arith.constant 0 : i32
    return %arg0, %arg1 : i32, i32
  }
}

</mosaic_0001>

<llo_original>
// kernel: tpu_custom_call.1
$region0: #{tpu_custom_call.1}
  #allocation0 [shape = 'u32[]', space=smem, size = 0x4, offset = 0x4, fixed_abs, tag = 'smem constant byte address 0x4 - core index']
  #allocation1 [shape = 'u32[144,128]{1,0:T(1,128)}', space=vmem, size = 0x12000, scoped, tag = 'internal scratch']
  %s0 = inlined_call_operand.vmem [shape: f32[128,32], index: 0, kind: input, shape index: {}]
  %s1 = inlined_call_operand.vmem [shape: bf16[32,128], index: 1, kind: input, shape index: {}]
  %s2 = inlined_call_operand.vmem [shape: f32[1,128], index: 2, kind: input, shape index: {}]
  %s3 = inlined_call_operand.hbm [shape: f32[128,128], index: 3, kind: output, shape index: {}]
  %s4 = sld [smem:[#allocation0]]
  $region22: #{tpu_custom_call.1} parent=0
    _
  %s6 = ssub.s32 1, %s4
  %s7 = scalar_select 0, %s6, %s4
  $region1: #{tpu_custom_call.1} parent=0
    #allocation2 [shape = 'u8[65536]{0}', space=vmem, size = 0x10000, scoped, tag = 'output window, operand 0, single buffered']
    #allocation3 [shape = 's32[1]{0}', space=sflag, size = 0x4, scoped, tag = 'scoped memory for tpu_custom_call.1']
    %8 = vsyncpa [#allocation3], 0
    // Predicated region
    $region2: #{tpu_custom_call.1} parent=1 // pred_check
      _
    $region3: #{tpu_custom_call.1} parent=1 // pred_check_branch
      %10 = sbr.rel (0) target = $region5
    $region4: #{tpu_custom_call.1} parent=1 // pred_region
      _
    $region5: #{tpu_custom_call.1} parent=1 // pred_fallthru
      _
    // Predicated region
    $region6: #{tpu_custom_call.1} parent=1 // pred_check
      _
    $region7: #{tpu_custom_call.1} parent=1 // pred_check_branch
      %12 = sbr.rel (0) target = $region9
    $region8: #{tpu_custom_call.1} parent=1 // pred_region
      _
    $region9: #{tpu_custom_call.1} parent=1 // pred_fallthru
      _
    // Predicated region
    $region10: #{tpu_custom_call.1} parent=1 // pred_check
      _
    $region11: #{tpu_custom_call.1} parent=1 // pred_check_branch
      %14 = sbr.rel (0) target = $region13
    $region12: #{tpu_custom_call.1} parent=1 // pred_region
      _
    $region13: #{tpu_custom_call.1} parent=1 // pred_fallthru
      _
    %v16 = vld [vmem:[%s0] sm:$0xff]
    %v17 = vld [vmem:[%s0 + $0x8] sm:$0xff]
    %v18 = vld [vmem:[%s0 + $0x10] sm:$0xff]
    %v19 = vld [vmem:[%s0 + $0x18] sm:$0xff]
    %v20 = vld [vmem:[%s0 + $0x20] sm:$0xff]
    %v21 = vld [vmem:[%s0 + $0x28] sm:$0xff]
    %v22 = vld [vmem:[%s0 + $0x30] sm:$0xff]
    %v23 = vld [vmem:[%s0 + $0x38] sm:$0xff]
    %v24 = vld [vmem:[%s0 + $0x40] sm:$0xff]
    %v25 = vld [vmem:[%s0 + $0x48] sm:$0xff]
    %v26 = vld [vmem:[%s0 + $0x50] sm:$0xff]
    %v27 = vld [vmem:[%s0 + $0x58] sm:$0xff]
    %v28 = vld [vmem:[%s0 + $0x60] sm:$0xff]
    %v29 = vld [vmem:[%s0 + $0x68] sm:$0xff]
    %v30 = vld [vmem:[%s0 + $0x70] sm:$0xff]
    %v31 = vld [vmem:[%s0 + $0x78] sm:$0xff]
    %v32 = vld [vmem:[%s1] sm:$0xf]
    %v33 = vld [vmem:[%s1 + $0x4] sm:$0xf]
    %v34 = vld [vmem:[%s1 + $0x8] sm:$0xf]
    %v35 = vld [vmem:[%s1 + $0xc] sm:$0xf]
    %v36 = vpack.c.bf16 %v17, %v16
    %v37 = vpack.c.bf16 %v19, %v18
    %v38 = vpack.c.bf16 %v21, %v20
    %v39 = vpack.c.bf16 %v23, %v22
    %v40 = vpack.c.bf16 %v25, %v24
    %v41 = vpack.c.bf16 %v27, %v26
    %v42 = vpack.c.bf16 %v29, %v28
    %v43 = vpack.c.bf16 %v31, %v30
    %v44 = vld [vmem:[%s2] sm:$0x1]
    %v46 = vlaneseq
    %v47 = vshrl.u32 %v46, 7
    %v48 = vsub.s32 0, %v47
    %v49 = vrot.slane %v44, %v48
    %v55 = vunpack.c.l.b16 %v32
    %v56 = vunpack.c.l.b16 %v33
    %v57 = vunpack.c.l.b16 %v34
    %v58 = vunpack.c.l.b16 %v35
    %v59 = vpack.c.b16 %v56, %v55
    %v60 = vpack.c.b16 %v58, %v57
    %vm63 = vcmask 261120
    %v65 = vsel %vm63, %v36, 0
    %v68 = vsel %vm63, %v37, 0
    %v71 = vsel %vm63, %v38, 0
    %v74 = vsel %vm63, %v39, 0
    %v77 = vsel %vm63, %v40, 0
    %v80 = vsel %vm63, %v41, 0
    %v83 = vsel %vm63, %v42, 0
    %v86 = vsel %vm63, %v43, 0
    %88 = vmatprep.subr.bf16.mxu0 0
    %89 = vmatpush1.bf16.msra.mxu0 %v59
    %90 = vmatprep.subr.bf16.mxu0 0
    %91 = vmatpush1.bf16.msra.mxu0 %v60
    %92 = vmatprep.subr.bf16.mxu0 0
    %93 = vmatpush1.bf16.msra.mxu0 0
    %94 = vmatprep.subr.bf16.mxu0 0
    %95 = vmatpush1.bf16.msra.mxu0 0
    %96 = vmatprep.subr.bf16.mxu0 0
    %97 = vmatpush1.bf16.msra.mxu0 0
    %98 = vmatprep.subr.bf16.mxu0 0
    %99 = vmatpush1.bf16.msra.mxu0 0
    %100 = vmatprep.subr.bf16.mxu0 0
    %101 = vmatpush1.bf16.msra.mxu0 0
    %102 = vmatprep.subr.bf16.mxu0 0
    %103 = vmatpush1.bf16.msra.mxu0 0
    %104 = vmatprep.subr.bf16.mxu0 0
    %105 = vmatpush1.bf16.msra.mxu0 0
    %106 = vmatprep.subr.bf16.mxu0 0
    %107 = vmatpush1.bf16.msra.mxu0 0
    %108 = vmatprep.subr.bf16.mxu0 0
    %109 = vmatpush1.bf16.msra.mxu0 0
    %110 = vmatprep.subr.bf16.mxu0 0
    %111 = vmatpush1.bf16.msra.mxu0 0
    %112 = vmatprep.subr.bf16.mxu0 0
    %113 = vmatpush1.bf16.msra.mxu0 0
    %114 = vmatprep.subr.bf16.mxu0 0
    %115 = vmatpush1.bf16.msra.mxu0 0
    %116 = vmatprep.subr.bf16.mxu0 0
    %117 = vmatpush1.bf16.msra.mxu0 0
    %118 = vmatprep.subr.bf16.mxu0 0
    %119 = vmatpush1.bf16.msra.mxu0 0
    %120 = vmatprep.mubr.bf16.mxu0 0
    %121 = vmatmul.mubr.bf16.gmra.mrb[0].mxu0 %v65
    %v122 = vpop.f32.mrb[0].mxu0
    %v123 = vadd.f32 %v49, %v122
    %v124 = vpop.f32.mrb[0].mxu0
    %v125 = vpop.f32.mrb[0].mxu0
    %v126 = vadd.f32 %v49, %v125
    %v127 = vpop.f32.mrb[0].mxu0
    %128 = vmatprep.mubr.bf16.mxu0 0
    %129 = vmatmul.mubr.bf16.gmra.mrb[0].mxu0 %v68
    %v130 = vpop.f32.mrb[0].mxu0
    %v131 = vadd.f32 %v49, %v130
    %v132 = vpop.f32.mrb[0].mxu0
    %v133 = vpop.f32.mrb[0].mxu0
    %v134 = vadd.f32 %v49, %v133
    %v135 = vpop.f32.mrb[0].mxu0
    %136 = vmatprep.mubr.bf16.mxu0 0
    %137 = vmatmul.mubr.bf16.gmra.mrb[0].mxu0 %v71
    %v138 = vpop.f32.mrb[0].mxu0
    %v139 = vadd.f32 %v49, %v138
    %v140 = vpop.f32.mrb[0].mxu0
    %v141 = vpop.f32.mrb[0].mxu0
    %v142 = vadd.f32 %v49, %v141
    %v143 = vpop.f32.mrb[0].mxu0
    %144 = vmatprep.mubr.bf16.mxu0 0
    %145 = vmatmul.mubr.bf16.gmra.mrb[0].mxu0 %v74
    %v146 = vpop.f32.mrb[0].mxu0
    %v147 = vadd.f32 %v49, %v146
    %v148 = vpop.f32.mrb[0].mxu0
    %v149 = vpop.f32.mrb[0].mxu0
    %v150 = vadd.f32 %v49, %v149
    %v151 = vpop.f32.mrb[0].mxu0
    %152 = vmatprep.mubr.bf16.mxu0 0
    %153 = vmatmul.mubr.bf16.gmra.mrb[0].mxu0 %v77
    %v154 = vpop.f32.mrb[0].mxu0
    %v155 = vadd.f32 %v49, %v154
    %v156 = vpop.f32.mrb[0].mxu0
    %v157 = vpop.f32.mrb[0].mxu0
    %v158 = vadd.f32 %v49, %v157
    %v159 = vpop.f32.mrb[0].mxu0
    %160 = vmatprep.mubr.bf16.mxu0 0
    %161 = vmatmul.mubr.bf16.gmra.mrb[0].mxu0 %v80
    %v162 = vpop.f32.mrb[0].mxu0
    %v163 = vadd.f32 %v49, %v162
    %v164 = vpop.f32.mrb[0].mxu0
    %v165 = vpop.f32.mrb[0].mxu0
    %v166 = vadd.f32 %v49, %v165
    %v167 = vpop.f32.mrb[0].mxu0
    %168 = vmatprep.mubr.bf16.mxu0 0
    %169 = vmatmul.mubr.bf16.gmra.mrb[0].mxu0 %v83
    %v170 = vpop.f32.mrb[0].mxu0
    %v171 = vadd.f32 %v49, %v170
    %v172 = vpop.f32.mrb[0].mxu0
    %v173 = vpop.f32.mrb[0].mxu0
    %v174 = vadd.f32 %v49, %v173
    %v175 = vpop.f32.mrb[0].mxu0
    %176 = vmatprep.mubr.bf16.mxu0 0
    %177 = vmatmul.mubr.bf16.gmra.mrb[0].mxu0 %v86
    %v178 = vpop.f32.mrb[0].mxu0
    %v179 = vadd.f32 %v49, %v178
    %v180 = vpop.f32.mrb[0].mxu0
    %v181 = vpop.f32.mrb[0].mxu0
    %v182 = vadd.f32 %v49, %v181
    %v183 = vpop.f32.mrb[0].mxu0
    %184 = vdwg.mxu0
    %v185 = vand.u32 2147483647, %v123
    %vm186 = vcmp.le.f32.partialorder %v185, 0.7853982
    %vm187 = vcmp.lt.s32.totalorder %v123, 0
    %v188 = vand.u32 %v123, 2139095040
    %v189 = vshrl.u32 %v188, 23
    %v190 = vsub.s32 %v189, 127
    %v191 = vand.u32 2147483647, %v123
    %v192 = vand.u32 %v191, 8388607
    %v193 = vor.u32 %v192, 8388608
    %v194 = vsub.s32 0, %v193
    %v195 = vadd.s32 %v190, 1
    %vm196 = vcmp.gt.s32.totalorder %v195, 0
    %v197 = vsel %vm196, %v195, 0
    %v198 = vshrl.u32 %v197, 5
    %v199 = vand.u32 %v197, 31
    %v200 = vsub.s32 32, %v199
    %v201 = vshrl.u32 683565275, %v200
    %v202 = vshll.u32 683565275, %v199
    %v203 = vshrl.u32 2475754826, %v200
    %v204 = vor.u32 %v202, %v203
    %v205 = vshll.u32 2475754826, %v199
    %v206 = vshrl.u32 2131351028, %v200
    %v207 = vor.u32 %v205, %v206
    %v208 = vshll.u32 2131351028, %v199
    %v209 = vshrl.u32 2102212464, %v200
    %v210 = vor.u32 %v208, %v209
    %v211 = vshll.u32 2102212464, %v199
    %v212 = vshrl.u32 920167782, %v200
    %v213 = vor.u32 %v211, %v212
    %v214 = vshll.u32 920167782, %v199
    %v215 = vshrl.u32 1326507024, %v200
    %v216 = vor.u32 %v214, %v215
    %vm217 = vcmp.lt.s32.totalorder %v198, 1
    %vm218 = vcmp.lt.s32.totalorder %v198, 2
    %vm219 = vcmp.lt.s32.totalorder %v198, 3
    %vm220 = vcmp.lt.s32.totalorder %v198, 4
    %v221 = vsel %vm217, %v201, %v204
    %v222 = vsel %vm220, %v210, 2102212464
    %v223 = vsel %vm219, %v207, %v222
    %v224 = vsel %vm218, %v221, %v223
    %v225 = vsel %vm217, %v204, %v207
    %v226 = vsel %vm220, %v213, 920167782
    %v227 = vsel %vm219, %v210, %v226
    %v228 = vsel %vm218, %v225, %v227
    %v229 = vsel %vm217, %v207, %v210
    %v230 = vsel %vm220, %v216, 1326507024
    %v231 = vsel %vm219, %v213, %v230
    %v232 = vsel %vm218, %v229, %v231
    %v233 = vshll.u32 %v193, 8
    %v234 = vmul.u32.u64.compose %v233, %v232
    %v235 = vextract.low.u32 %v234
    %v236 = vextract.high.u32 %v234
    %v237 = vmul.u32.u64.compose %v233, %v228
    %v238 = vextract.low.u32 %v237
    %v239 = vextract.high.u32 %v237
    %v240 = vmul.u32 %v233, %v224
    %v241 = vadd.s32 %v236, %v238
    %vm242 = vc.u32 %v236, %v238
    %v243 = vadd.s32 %v239, 1
    %v244 = vsel %vm242, %v243, %v239
    %v245 = vadd.s32 %v240, %v244
    %v246 = vadd.s32 %v245, 536870912
    %v247 = vshrl.u32 %v246, 30
    %v248 = vshll.u32 %v247, 30
    %v249 = vsub.s32 %v245, %v248
    %vm250 = vcmp.lt.s32.totalorder %v249, 0
    %v251 = vsub.s32 0, %v249
    %v252 = vsel %vm250, %v251, %v249
    %v253 = vclz %v252
    %v254 = vsub.s32 %v253, 2
    %vm255 = vcmp.gt.s32.totalorder 0, %v254
    %v256 = vsel %vm255, 0, %v254
    %v257 = vsub.s32 32, %v256
    %v258 = vshll.u32 %v249, %v256
    %v259 = vshrl.u32 %v241, %v257
    %v260 = vor.u32 %v258, %v259
    %v261 = vsub.s32 4294967266, %v256
    %v262 = vadd.s32 %v261, 127
    %v263 = vshll.u32 %v262, 23
    %v264 = vor.u32 4788187, %v263
    %v265 = vand.u32 2147483647, %v264
    %v267 = vcvt.s32.f32 %v260
    %v268 = vmul.f32 %v267, %v265
    %v269 = vxor.u32 %v268, 2147483648
    %v270 = vsel %vm187, %v269, %v268
    %v271 = vsub.s32 4, %v247
    %v272 = vsel %vm187, %v271, %v247
    %v273 = vsel %vm186, %v123, %v270
    %v274 = vsel %vm186, 0, %v272
    %v275 = vcosq.f32.pop %v273
    %v276 = vsinq.f32.pop %v273
    %vm277 = vweird.f32 %v123
    %v278 = vadd.s32 %v274, 3
    %v279 = vand.u32 %v278, 3
    %vm280 = vcmp.lt.s32.totalorder %v279, 2
    %vm281 = vcmp.eq.s32.totalorder %v279, 0
    %v282 = vxor.u32 %v276, 2147483648
    %v283 = vsel %vm281, %v275, %v282
    %vm284 = vcmp.eq.s32.totalorder %v279, 2
    %v285 = vxor.u32 %v275, 2147483648
    %v286 = vsel %vm284, %v285, %v276
    %v287 = vsel %vm280, %v283, %v286
    %v288 = vsel %vm277, nan, %v287
    %v289 = vand.u32 2147483647, %v126
    %vm290 = vcmp.le.f32.partialorder %v289, 0.7853982
    %vm291 = vcmp.lt.s32.totalorder %v126, 0
    %v292 = vand.u32 %v126, 2139095040
    %v293 = vshrl.u32 %v292, 23
    %v294 = vsub.s32 %v293, 127
    %v295 = vand.u32 2147483647, %v126
    %v296 = vand.u32 %v295, 8388607
    %v297 = vor.u32 %v296, 8388608
    %v298 = vsub.s32 0, %v297
    %v299 = vadd.s32 %v294, 1
    %vm300 = vcmp.gt.s32.totalorder %v299, 0
    %v301 = vsel %vm300, %v299, 0
    %v302 = vshrl.u32 %v301, 5
    %v303 = vand.u32 %v301, 31
    %v304 = vsub.s32 32, %v303
    %v305 = vshrl.u32 683565275, %v304
    %v306 = vshll.u32 683565275, %v303
    %v307 = vshrl.u32 2475754826, %v304
    %v308 = vor.u32 %v306, %v307
    %v309 = vshll.u32 2475754826, %v303
    %v310 = vshrl.u32 2131351028, %v304
    %v311 = vor.u32 %v309, %v310
    %v312 = vshll.u32 2131351028, %v303
    %v313 = vshrl.u32 2102212464, %v304
    %v314 = vor.u32 %v312, %v313
    %v315 = vshll.u32 2102212464, %v303
    %v316 = vshrl.u32 920167782, %v304
    %v317 = vor.u32 %v315, %v316
    %v318 = vshll.u32 920167782, %v303
    %v319 = vshrl.u32 1326507024, %v304
    %v320 = vor.u32 %v318, %v319
    %vm321 = vcmp.lt.s32.totalorder %v302, 1
    %vm322 = vcmp.lt.s32.totalorder %v302, 2
    %vm323 = vcmp.lt.s32.totalorder %v302, 3
    %vm324 = vcmp.lt.s32.totalorder %v302, 4
    %v325 = vsel %vm321, %v305, %v308
    %v326 = vsel %vm324, %v314, 2102212464
    %v327 = vsel %vm323, %v311, %v326
    %v328 = vsel %vm322, %v325, %v327
    %v329 = vsel %vm321, %v308, %v311
    %v330 = vsel %vm324, %v317, 920167782
    %v331 = vsel %vm323, %v314, %v330
    %v332 = vsel %vm322, %v329, %v331
    %v333 = vsel %vm321, %v311, %v314
    %v334 = vsel %vm324, %v320, 1326507024
    %v335 = vsel %vm323, %v317, %v334
    %v336 = vsel %vm322, %v333, %v335
    %v337 = vshll.u32 %v297, 8
    %v338 = vmul.u32.u64.compose %v337, %v336
    %v339 = vextract.low.u32 %v338
    %v340 = vextract.high.u32 %v338
    %v341 = vmul.u32.u64.compose %v337, %v332
    %v342 = vextract.low.u32 %v341
    %v343 = vextract.high.u32 %v341
    %v344 = vmul.u32 %v337, %v328
    %v345 = vadd.s32 %v340, %v342
    %vm346 = vc.u32 %v340, %v342
    %v347 = vadd.s32 %v343, 1
    %v348 = vsel %vm346, %v347, %v343
    %v349 = vadd.s32 %v344, %v348
    %v350 = vadd.s32 %v349, 536870912
    %v351 = vshrl.u32 %v350, 30
    %v352 = vshll.u32 %v351, 30
    %v353 = vsub.s32 %v349, %v352
    %vm354 = vcmp.lt.s32.totalorder %v353, 0
    %v355 = vsub.s32 0, %v353
    %v356 = vsel %vm354, %v355, %v353
    %v357 = vclz %v356
    %v358 = vsub.s32 %v357, 2
    %vm359 = vcmp.gt.s32.totalorder 0, %v358
    %v360 = vsel %vm359, 0, %v358
    %v361 = vsub.s32 32, %v360
    %v362 = vshll.u32 %v353, %v360
    %v363 = vshrl.u32 %v345, %v361
    %v364 = vor.u32 %v362, %v363
    %v365 = vsub.s32 4294967266, %v360
    %v366 = vadd.s32 %v365, 127
    %v367 = vshll.u32 %v366, 23
    %v368 = vor.u32 4788187, %v367
    %v369 = vand.u32 2147483647, %v368
    %v371 = vcvt.s32.f32 %v364
    %v372 = vmul.f32 %v371, %v369
    %v373 = vxor.u32 %v372, 2147483648
    %v374 = vsel %vm291, %v373, %v372
    %v375 = vsub.s32 4, %v351
    %v376 = vsel %vm291, %v375, %v351
    %v377 = vsel %vm290, %v126, %v374
    %v378 = vsel %vm290, 0, %v376
    %v379 = vcosq.f32.pop %v377
    %v380 = vsinq.f32.pop %v377
    %vm381 = vweird.f32 %v126
    %v382 = vadd.s32 %v378, 3
    %v383 = vand.u32 %v382, 3
    %vm384 = vcmp.lt.s32.totalorder %v383, 2
    %vm385 = vcmp.eq.s32.totalorder %v383, 0
    %v386 = vxor.u32 %v380, 2147483648
    %v387 = vsel %vm385, %v379, %v386
    %vm388 = vcmp.eq.s32.totalorder %v383, 2
    %v389 = vxor.u32 %v379, 2147483648
    %v390 = vsel %vm388, %v389, %v380
    %v391 = vsel %vm384, %v387, %v390
    %v392 = vsel %vm381, nan, %v391
    %v393 = vand.u32 2147483647, %v131
    %vm394 = vcmp.le.f32.partialorder %v393, 0.7853982
    %vm395 = vcmp.lt.s32.totalorder %v131, 0
    %v396 = vand.u32 %v131, 2139095040
    %v397 = vshrl.u32 %v396, 23
    %v398 = vsub.s32 %v397, 127
    %v399 = vand.u32 2147483647, %v131
    %v400 = vand.u32 %v399, 8388607
    %v401 = vor.u32 %v400, 8388608
    %v402 = vsub.s32 0, %v401
    %v403 = vadd.s32 %v398, 1
    %vm404 = vcmp.gt.s32.totalorder %v403, 0
    %v405 = vsel %vm404, %v403, 0
    %v406 = vshrl.u32 %v405, 5
    %v407 = vand.u32 %v405, 31
    %v408 = vsub.s32 32, %v407
    %v409 = vshrl.u32 683565275, %v408
    %v410 = vshll.u32 683565275, %v407
    %v411 = vshrl.u32 2475754826, %v408
    %v412 = vor.u32 %v410, %v411
    %v413 = vshll.u32 2475754826, %v407
    %v414 = vshrl.u32 2131351028, %v408
    %v415 = vor.u32 %v413, %v414
    %v416 = vshll.u32 2131351028, %v407
    %v417 = vshrl.u32 2102212464, %v408
    %v418 = vor.u32 %v416, %v417
    %v419 = vshll.u32 2102212464, %v407
    %v420 = vshrl.u32 920167782, %v408
    %v421 = vor.u32 %v419, %v420
    %v422 = vshll.u32 920167782, %v407
    %v423 = vshrl.u32 1326507024, %v408
    %v424 = vor.u32 %v422, %v423
    %vm425 = vcmp.lt.s32.totalorder %v406, 1
    %vm426 = vcmp.lt.s32.totalorder %v406, 2
    %vm427 = vcmp.lt.s32.totalorder %v406, 3
    %vm428 = vcmp.lt.s32.totalorder %v406, 4
    %v429 = vsel %vm425, %v409, %v412
    %v430 = vsel %vm428, %v418, 2102212464
    %v431 = vsel %vm427, %v415, %v430
    %v432 = vsel %vm426, %v429, %v431
    %v433 = vsel %vm425, %v412, %v415
    %v434 = vsel %vm428, %v421, 920167782
    %v435 = vsel %vm427, %v418, %v434
    %v436 = vsel %vm426, %v433, %v435
    %v437 = vsel %vm425, %v415, %v418
    %v438 = vsel %vm428, %v424, 1326507024
    %v439 = vsel %vm427, %v421, %v438
    %v440 = vsel %vm426, %v437, %v439
    %v441 = vshll.u32 %v401, 8
    %v442 = vmul.u32.u64.compose %v441, %v440
    %v443 = vextract.low.u32 %v442
    %v444 = vextract.high.u32 %v442
    %v445 = vmul.u32.u64.compose %v441, %v436
    %v446 = vextract.low.u32 %v445
    %v447 = vextract.high.u32 %v445
    %v448 = vmul.u32 %v441, %v432
    %v449 = vadd.s32 %v444, %v446
    %vm450 = vc.u32 %v444, %v446
    %v451 = vadd.s32 %v447, 1
    %v452 = vsel %vm450, %v451, %v447
    %v453 = vadd.s32 %v448, %v452
    %v454 = vadd.s32 %v453, 536870912
    %v455 = vshrl.u32 %v454, 30
    %v456 = vshll.u32 %v455, 30
    %v457 = vsub.s32 %v453, %v456
    %vm458 = vcmp.lt.s32.totalorder %v457, 0
    %v459 = vsub.s32 0, %v457
    %v460 = vsel %vm458, %v459, %v457
    %v461 = vclz %v460
    %v462 = vsub.s32 %v461, 2
    %vm463 = vcmp.gt.s32.totalorder 0, %v462
    %v464 = vsel %vm463, 0, %v462
    %v465 = vsub.s32 32, %v464
    %v466 = vshll.u32 %v457, %v464
    %v467 = vshrl.u32 %v449, %v465
    %v468 = vor.u32 %v466, %v467
    %v469 = vsub.s32 4294967266, %v464
    %v470 = vadd.s32 %v469, 127
    %v471 = vshll.u32 %v470, 23
    %v472 = vor.u32 4788187, %v471
    %v473 = vand.u32 2147483647, %v472
    %v475 = vcvt.s32.f32 %v468
    %v476 = vmul.f32 %v475, %v473
    %v477 = vxor.u32 %v476, 2147483648
    %v478 = vsel %vm395, %v477, %v476
    %v479 = vsub.s32 4, %v455
    %v480 = vsel %vm395, %v479, %v455
    %v481 = vsel %vm394, %v131, %v478
    %v482 = vsel %vm394, 0, %v480
    %v483 = vcosq.f32.pop %v481
    %v484 = vsinq.f32.pop %v481
    %vm485 = vweird.f32 %v131
    %v486 = vadd.s32 %v482, 3
    %v487 = vand.u32 %v486, 3
    %vm488 = vcmp.lt.s32.totalorder %v487, 2
    %vm489 = vcmp.eq.s32.totalorder %v487, 0
    %v490 = vxor.u32 %v484, 2147483648
    %v491 = vsel %vm489, %v483, %v490
    %vm492 = vcmp.eq.s32.totalorder %v487, 2
    %v493 = vxor.u32 %v483, 2147483648
    %v494 = vsel %vm492, %v493, %v484
    %v495 = vsel %vm488, %v491, %v494
    %v496 = vsel %vm485, nan, %v495
    %v497 = vand.u32 2147483647, %v134
    %vm498 = vcmp.le.f32.partialorder %v497, 0.7853982
    %vm499 = vcmp.lt.s32.totalorder %v134, 0
    %v500 = vand.u32 %v134, 2139095040
    %v501 = vshrl.u32 %v500, 23
    %v502 = vsub.s32 %v501, 127
    %v503 = vand.u32 2147483647, %v134
    %v504 = vand.u32 %v503, 8388607
    %v505 = vor.u32 %v504, 8388608
    %v506 = vsub.s32 0, %v505
    %v507 = vadd.s32 %v502, 1
    %vm508 = vcmp.gt.s32.totalorder %v507, 0
    %v509 = vsel %vm508, %v507, 0
    %v510 = vshrl.u32 %v509, 5
    %v511 = vand.u32 %v509, 31
    %v512 = vsub.s32 32, %v511
    %v513 = vshrl.u32 683565275, %v512
    %v514 = vshll.u32 683565275, %v511
    %v515 = vshrl.u32 2475754826, %v512
    %v516 = vor.u32 %v514, %v515
    %v517 = vshll.u32 2475754826, %v511
    %v518 = vshrl.u32 2131351028, %v512
    %v519 = vor.u32 %v517, %v518
    %v520 = vshll.u32 2131351028, %v511
    %v521 = vshrl.u32 2102212464, %v512
    %v522 = vor.u32 %v520, %v521
    %v523 = vshll.u32 2102212464, %v511
    %v524 = vshrl.u32 920167782, %v512
    %v525 = vor.u32 %v523, %v524
    %v526 = vshll.u32 920167782, %v511
    %v527 = vshrl.u32 1326507024, %v512
    %v528 = vor.u32 %v526, %v527
    %vm529 = vcmp.lt.s32.totalorder %v510, 1
    %vm530 = vcmp.lt.s32.totalorder %v510, 2
    %vm531 = vcmp.lt.s32.totalorder %v510, 3
    %vm532 = vcmp.lt.s32.totalorder %v510, 4
    %v533 = vsel %vm529, %v513, %v516
    %v534 = vsel %vm532, %v522, 2102212464
    %v535 = vsel %vm531, %v519, %v534
    %v536 = vsel %vm530, %v533, %v535
    %v537 = vsel %vm529, %v516, %v519
    %v538 = vsel %vm532, %v525, 920167782
    %v539 = vsel %vm531, %v522, %v538
    %v540 = vsel %vm530, %v537, %v539
    %v541 = vsel %vm529, %v519, %v522
    %v542 = vsel %vm532, %v528, 1326507024
    %v543 = vsel %vm531, %v525, %v542
    %v544 = vsel %vm530, %v541, %v543
    %v545 = vshll.u32 %v505, 8
    %v546 = vmul.u32.u64.compose %v545, %v544
    %v547 = vextract.low.u32 %v546
    %v548 = vextract.high.u32 %v546
    %v549 = vmul.u32.u64.compose %v545, %v540
    %v550 = vextract.low.u32 %v549
    %v551 = vextract.high.u32 %v549
    %v552 = vmul.u32 %v545, %v536
    %v553 = vadd.s32 %v548, %v550
    %vm554 = vc.u32 %v548, %v550
    %v555 = vadd.s32 %v551, 1
    %v556 = vsel %vm554, %v555, %v551
    %v557 = vadd.s32 %v552, %v556
    %v558 = vadd.s32 %v557, 536870912
    %v559 = vshrl.u32 %v558, 30
    %v560 = vshll.u32 %v559, 30
    %v561 = vsub.s32 %v557, %v560
    %vm562 = vcmp.lt.s32.totalorder %v561, 0
    %v563 = vsub.s32 0, %v561
    %v564 = vsel %vm562, %v563, %v561
    %v565 = vclz %v564
    %v566 = vsub.s32 %v565, 2
    %vm567 = vcmp.gt.s32.totalorder 0, %v566
    %v568 = vsel %vm567, 0, %v566
    %v569 = vsub.s32 32, %v568
    %v570 = vshll.u32 %v561, %v568
    %v571 = vshrl.u32 %v553, %v569
    %v572 = vor.u32 %v570, %v571
    %v573 = vsub.s32 4294967266, %v568
    %v574 = vadd.s32 %v573, 127
    %v575 = vshll.u32 %v574, 23
    %v576 = vor.u32 4788187, %v575
    %v577 = vand.u32 2147483647, %v576
    %v579 = vcvt.s32.f32 %v572
    %v580 = vmul.f32 %v579, %v577
    %v581 = vxor.u32 %v580, 2147483648
    %v582 = vsel %vm499, %v581, %v580
    %v583 = vsub.s32 4, %v559
    %v584 = vsel %vm499, %v583, %v559
    %v585 = vsel %vm498, %v134, %v582
    %v586 = vsel %vm498, 0, %v584
    %v587 = vcosq.f32.pop %v585
    %v588 = vsinq.f32.pop %v585
    %vm589 = vweird.f32 %v134
    %v590 = vadd.s32 %v586, 3
    %v591 = vand.u32 %v590, 3
    %vm592 = vcmp.lt.s32.totalorder %v591, 2
    %vm593 = vcmp.eq.s32.totalorder %v591, 0
    %v594 = vxor.u32 %v588, 2147483648
    %v595 = vsel %vm593, %v587, %v594
    %vm596 = vcmp.eq.s32.totalorder %v591, 2
    %v597 = vxor.u32 %v587, 2147483648
    %v598 = vsel %vm596, %v597, %v588
    %v599 = vsel %vm592, %v595, %v598
    %v600 = vsel %vm589, nan, %v599
    %v601 = vand.u32 2147483647, %v139
    %vm602 = vcmp.le.f32.partialorder %v601, 0.7853982
    %vm603 = vcmp.lt.s32.totalorder %v139, 0
    %v604 = vand.u32 %v139, 2139095040
    %v605 = vshrl.u32 %v604, 23
    %v606 = vsub.s32 %v605, 127
    %v607 = vand.u32 2147483647, %v139
    %v608 = vand.u32 %v607, 8388607
    %v609 = vor.u32 %v608, 8388608
    %v610 = vsub.s32 0, %v609
    %v611 = vadd.s32 %v606, 1
    %vm612 = vcmp.gt.s32.totalorder %v611, 0
    %v613 = vsel %vm612, %v611, 0
    %v614 = vshrl.u32 %v613, 5
    %v615 = vand.u32 %v613, 31
    %v616 = vsub.s32 32, %v615
    %v617 = vshrl.u32 683565275, %v616
    %v618 = vshll.u32 683565275, %v615
    %v619 = vshrl.u32 2475754826, %v616
    %v620 = vor.u32 %v618, %v619
    %v621 = vshll.u32 2475754826, %v615
    %v622 = vshrl.u32 2131351028, %v616
    %v623 = vor.u32 %v621, %v622
    %v624 = vshll.u32 2131351028, %v615
    %v625 = vshrl.u32 2102212464, %v616
    %v626 = vor.u32 %v624, %v625
    %v627 = vshll.u32 2102212464, %v615
    %v628 = vshrl.u32 920167782, %v616
    %v629 = vor.u32 %v627, %v628
    %v630 = vshll.u32 920167782, %v615
    %v631 = vshrl.u32 1326507024, %v616
    %v632 = vor.u32 %v630, %v631
    %vm633 = vcmp.lt.s32.totalorder %v614, 1
    %vm634 = vcmp.lt.s32.totalorder %v614, 2
    %vm635 = vcmp.lt.s32.totalorder %v614, 3
    %vm636 = vcmp.lt.s32.totalorder %v614, 4
    %v637 = vsel %vm633, %v617, %v620
    %v638 = vsel %vm636, %v626, 2102212464
    %v639 = vsel %vm635, %v623, %v638
    %v640 = vsel %vm634, %v637, %v639
    %v641 = vsel %vm633, %v620, %v623
    %v642 = vsel %vm636, %v629, 920167782
    %v643 = vsel %vm635, %v626, %v642
    %v644 = vsel %vm634, %v641, %v643
    %v645 = vsel %vm633, %v623, %v626
    %v646 = vsel %vm636, %v632, 1326507024
    %v647 = vsel %vm635, %v629, %v646
    %v648 = vsel %vm634, %v645, %v647
    %v649 = vshll.u32 %v609, 8
    %v650 = vmul.u32.u64.compose %v649, %v648
    %v651 = vextract.low.u32 %v650
    %v652 = vextract.high.u32 %v650
    %v653 = vmul.u32.u64.compose %v649, %v644
    %v654 = vextract.low.u32 %v653
    %v655 = vextract.high.u32 %v653
    %v656 = vmul.u32 %v649, %v640
    %v657 = vadd.s32 %v652, %v654
    %vm658 = vc.u32 %v652, %v654
    %v659 = vadd.s32 %v655, 1
    %v660 = vsel %vm658, %v659, %v655
    %v661 = vadd.s32 %v656, %v660
    %v662 = vadd.s32 %v661, 536870912
    %v663 = vshrl.u32 %v662, 30
    %v664 = vshll.u32 %v663, 30
    %v665 = vsub.s32 %v661, %v664
    %vm666 = vcmp.lt.s32.totalorder %v665, 0
    %v667 = vsub.s32 0, %v665
    %v668 = vsel %vm666, %v667, %v665
    %v669 = vclz %v668
    %v670 = vsub.s32 %v669, 2
    %vm671 = vcmp.gt.s32.totalorder 0, %v670
    %v672 = vsel %vm671, 0, %v670
    %v673 = vsub.s32 32, %v672
    %v674 = vshll.u32 %v665, %v672
    %v675 = vshrl.u32 %v657, %v673
    %v676 = vor.u32 %v674, %v675
    %v677 = vsub.s32 4294967266, %v672
    %v678 = vadd.s32 %v677, 127
    %v679 = vshll.u32 %v678, 23
    %v680 = vor.u32 4788187, %v679
    %v681 = vand.u32 2147483647, %v680
    %v683 = vcvt.s32.f32 %v676
    %v684 = vmul.f32 %v683, %v681
    %v685 = vxor.u32 %v684, 2147483648
    %v686 = vsel %vm603, %v685, %v684
    %v687 = vsub.s32 4, %v663
    %v688 = vsel %vm603, %v687, %v663
    %v689 = vsel %vm602, %v139, %v686
    %v690 = vsel %vm602, 0, %v688
    %v691 = vcosq.f32.pop %v689
    %v692 = vsinq.f32.pop %v689
    %vm693 = vweird.f32 %v139
    %v694 = vadd.s32 %v690, 3
    %v695 = vand.u32 %v694, 3
    %vm696 = vcmp.lt.s32.totalorder %v695, 2
    %vm697 = vcmp.eq.s32.totalorder %v695, 0
    %v698 = vxor.u32 %v692, 2147483648
    %v699 = vsel %vm697, %v691, %v698
    %vm700 = vcmp.eq.s32.totalorder %v695, 2
    %v701 = vxor.u32 %v691, 2147483648
    %v702 = vsel %vm700, %v701, %v692
    %v703 = vsel %vm696, %v699, %v702
    %v704 = vsel %vm693, nan, %v703
    %v705 = vand.u32 2147483647, %v142
    %vm706 = vcmp.le.f32.partialorder %v705, 0.7853982
    %vm707 = vcmp.lt.s32.totalorder %v142, 0
    %v708 = vand.u32 %v142, 2139095040
    %v709 = vshrl.u32 %v708, 23
    %v710 = vsub.s32 %v709, 127
    %v711 = vand.u32 2147483647, %v142
    %v712 = vand.u32 %v711, 8388607
    %v713 = vor.u32 %v712, 8388608
    %v714 = vsub.s32 0, %v713
    %v715 = vadd.s32 %v710, 1
    %vm716 = vcmp.gt.s32.totalorder %v715, 0
    %v717 = vsel %vm716, %v715, 0
    %v718 = vshrl.u32 %v717, 5
    %v719 = vand.u32 %v717, 31
    %v720 = vsub.s32 32, %v719
    %v721 = vshrl.u32 683565275, %v720
    %v722 = vshll.u32 683565275, %v719
    %v723 = vshrl.u32 2475754826, %v720
    %v724 = vor.u32 %v722, %v723
    %v725 = vshll.u32 2475754826, %v719
    %v726 = vshrl.u32 2131351028, %v720
    %v727 = vor.u32 %v725, %v726
    %v728 = vshll.u32 2131351028, %v719
    %v729 = vshrl.u32 2102212464, %v720
    %v730 = vor.u32 %v728, %v729
    %v731 = vshll.u32 2102212464, %v719
    %v732 = vshrl.u32 920167782, %v720
    %v733 = vor.u32 %v731, %v732
    %v734 = vshll.u32 920167782, %v719
    %v735 = vshrl.u32 1326507024, %v720
    %v736 = vor.u32 %v734, %v735
    %vm737 = vcmp.lt.s32.totalorder %v718, 1
    %vm738 = vcmp.lt.s32.totalorder %v718, 2
    %vm739 = vcmp.lt.s32.totalorder %v718, 3
    %vm740 = vcmp.lt.s32.totalorder %v718, 4
    %v741 = vsel %vm737, %v721, %v724
    %v742 = vsel %vm740, %v730, 2102212464
    %v743 = vsel %vm739, %v727, %v742
    %v744 = vsel %vm738, %v741, %v743
    %v745 = vsel %vm737, %v724, %v727
    %v746 = vsel %vm740, %v733, 920167782
    %v747 = vsel %vm739, %v730, %v746
    %v748 = vsel %vm738, %v745, %v747
    %v749 = vsel %vm737, %v727, %v730
    %v750 = vsel %vm740, %v736, 1326507024
    %v751 = vsel %vm739, %v733, %v750
    %v752 = vsel %vm738, %v749, %v751
    %v753 = vshll.u32 %v713, 8
    %v754 = vmul.u32.u64.compose %v753, %v752
    %v755 = vextract.low.u32 %v754
    %v756 = vextract.high.u32 %v754
    %v757 = vmul.u32.u64.compose %v753, %v748
    %v758 = vextract.low.u32 %v757
    %v759 = vextract.high.u32 %v757
    %v760 = vmul.u32 %v753, %v744
    %v761 = vadd.s32 %v756, %v758
    %vm762 = vc.u32 %v756, %v758
    %v763 = vadd.s32 %v759, 1
    %v764 = vsel %vm762, %v763, %v759
    %v765 = vadd.s32 %v760, %v764
    %v766 = vadd.s32 %v765, 536870912
    %v767 = vshrl.u32 %v766, 30
    %v768 = vshll.u32 %v767, 30
    %v769 = vsub.s32 %v765, %v768
    %vm770 = vcmp.lt.s32.totalorder %v769, 0
    %v771 = vsub.s32 0, %v769
    %v772 = vsel %vm770, %v771, %v769
    %v773 = vclz %v772
    %v774 = vsub.s32 %v773, 2
    %vm775 = vcmp.gt.s32.totalorder 0, %v774
    %v776 = vsel %vm775, 0, %v774
    %v777 = vsub.s32 32, %v776
    %v778 = vshll.u32 %v769, %v776
    %v779 = vshrl.u32 %v761, %v777
    %v780 = vor.u32 %v778, %v779
    %v781 = vsub.s32 4294967266, %v776
    %v782 = vadd.s32 %v781, 127
    %v783 = vshll.u32 %v782, 23
    %v784 = vor.u32 4788187, %v783
    %v785 = vand.u32 2147483647, %v784
    %v787 = vcvt.s32.f32 %v780
    %v788 = vmul.f32 %v787, %v785
    %v789 = vxor.u32 %v788, 2147483648
    %v790 = vsel %vm707, %v789, %v788
    %v791 = vsub.s32 4, %v767
    %v792 = vsel %vm707, %v791, %v767
    %v793 = vsel %vm706, %v142, %v790
    %v794 = vsel %vm706, 0, %v792
    %v795 = vcosq.f32.pop %v793
    %v796 = vsinq.f32.pop %v793
    %vm797 = vweird.f32 %v142
    %v798 = vadd.s32 %v794, 3
    %v799 = vand.u32 %v798, 3
    %vm800 = vcmp.lt.s32.totalorder %v799, 2
    %vm801 = vcmp.eq.s32.totalorder %v799, 0
    %v802 = vxor.u32 %v796, 2147483648
    %v803 = vsel %vm801, %v795, %v802
    %vm804 = vcmp.eq.s32.totalorder %v799, 2
    %v805 = vxor.u32 %v795, 2147483648
    %v806 = vsel %vm804, %v805, %v796
    %v807 = vsel %vm800, %v803, %v806
    %v808 = vsel %vm797, nan, %v807
    %v809 = vand.u32 2147483647, %v147
    %vm810 = vcmp.le.f32.partialorder %v809, 0.7853982
    %vm811 = vcmp.lt.s32.totalorder %v147, 0
    %v812 = vand.u32 %v147, 2139095040
    %v813 = vshrl.u32 %v812, 23
    %v814 = vsub.s32 %v813, 127
    %v815 = vand.u32 2147483647, %v147
    %v816 = vand.u32 %v815, 8388607
    %v817 = vor.u32 %v816, 8388608
    %v818 = vsub.s32 0, %v817
    %v819 = vadd.s32 %v814, 1
    %vm820 = vcmp.gt.s32.totalorder %v819, 0
    %v821 = vsel %vm820, %v819, 0
    %v822 = vshrl.u32 %v821, 5
    %v823 = vand.u32 %v821, 31
    %v824 = vsub.s32 32, %v823
    %v825 = vshrl.u32 683565275, %v824
    %v826 = vshll.u32 683565275, %v823
    %v827 = vshrl.u32 2475754826, %v824
    %v828 = vor.u32 %v826, %v827
    %v829 = vshll.u32 2475754826, %v823
    %v830 = vshrl.u32 2131351028, %v824
    %v831 = vor.u32 %v829, %v830
    %v832 = vshll.u32 2131351028, %v823
    %v833 = vshrl.u32 2102212464, %v824
    %v834 = vor.u32 %v832, %v833
    %v835 = vshll.u32 2102212464, %v823
    %v836 = vshrl.u32 920167782, %v824
    %v837 = vor.u32 %v835, %v836
    %v838 = vshll.u32 920167782, %v823
    %v839 = vshrl.u32 1326507024, %v824
    %v840 = vor.u32 %v838, %v839
    %vm841 = vcmp.lt.s32.totalorder %v822, 1
    %vm842 = vcmp.lt.s32.totalorder %v822, 2
    %vm843 = vcmp.lt.s32.totalorder %v822, 3
    %vm844 = vcmp.lt.s32.totalorder %v822, 4
    %v845 = vsel %vm841, %v825, %v828
    %v846 = vsel %vm844, %v834, 2102212464
    %v847 = vsel %vm843, %v831, %v846
    %v848 = vsel %vm842, %v845, %v847
    %v849 = vsel %vm841, %v828, %v831
    %v850 = vsel %vm844, %v837, 920167782
    %v851 = vsel %vm843, %v834, %v850
    %v852 = vsel %vm842, %v849, %v851
    %v853 = vsel %vm841, %v831, %v834
    %v854 = vsel %vm844, %v840, 1326507024
    %v855 = vsel %vm843, %v837, %v854
    %v856 = vsel %vm842, %v853, %v855
    %v857 = vshll.u32 %v817, 8
    %v858 = vmul.u32.u64.compose %v857, %v856
    %v859 = vextract.low.u32 %v858
    %v860 = vextract.high.u32 %v858
    %v861 = vmul.u32.u64.compose %v857, %v852
    %v862 = vextract.low.u32 %v861
    %v863 = vextract.high.u32 %v861
    %v864 = vmul.u32 %v857, %v848
    %v865 = vadd.s32 %v860, %v862
    %vm866 = vc.u32 %v860, %v862
    %v867 = vadd.s32 %v863, 1
    %v868 = vsel %vm866, %v867, %v863
    %v869 = vadd.s32 %v864, %v868
    %v870 = vadd.s32 %v869, 536870912
    %v871 = vshrl.u32 %v870, 30
    %v872 = vshll.u32 %v871, 30
    %v873 = vsub.s32 %v869, %v872
    %vm874 = vcmp.lt.s32.totalorder %v873, 0
    %v875 = vsub.s32 0, %v873
    %v876 = vsel %vm874, %v875, %v873
    %v877 = vclz %v876
    %v878 = vsub.s32 %v877, 2
    %vm879 = vcmp.gt.s32.totalorder 0, %v878
    %v880 = vsel %vm879, 0, %v878
    %v881 = vsub.s32 32, %v880
    %v882 = vshll.u32 %v873, %v880
    %v883 = vshrl.u32 %v865, %v881
    %v884 = vor.u32 %v882, %v883
    %v885 = vsub.s32 4294967266, %v880
    %v886 = vadd.s32 %v885, 127
    %v887 = vshll.u32 %v886, 23
    %v888 = vor.u32 4788187, %v887
    %v889 = vand.u32 2147483647, %v888
    %v891 = vcvt.s32.f32 %v884
    %v892 = vmul.f32 %v891, %v889
    %v893 = vxor.u32 %v892, 2147483648
    %v894 = vsel %vm811, %v893, %v892
    %v895 = vsub.s32 4, %v871
    %v896 = vsel %vm811, %v895, %v871
    %v897 = vsel %vm810, %v147, %v894
    %v898 = vsel %vm810, 0, %v896
    %v899 = vcosq.f32.pop %v897
    %v900 = vsinq.f32.pop %v897
    %vm901 = vweird.f32 %v147
    %v902 = vadd.s32 %v898, 3
    %v903 = vand.u32 %v902, 3
    %vm904 = vcmp.lt.s32.totalorder %v903, 2
    %vm905 = vcmp.eq.s32.totalorder %v903, 0
    %v906 = vxor.u32 %v900, 2147483648
    %v907 = vsel %vm905, %v899, %v906
    %vm908 = vcmp.eq.s32.totalorder %v903, 2
    %v909 = vxor.u32 %v899, 2147483648
    %v910 = vsel %vm908, %v909, %v900
    %v911 = vsel %vm904, %v907, %v910
    %v912 = vsel %vm901, nan, %v911
    %v913 = vand.u32 2147483647, %v150
    %vm914 = vcmp.le.f32.partialorder %v913, 0.7853982
    %vm915 = vcmp.lt.s32.totalorder %v150, 0
    %v916 = vand.u32 %v150, 2139095040
    %v917 = vshrl.u32 %v916, 23
    %v918 = vsub.s32 %v917, 127
    %v919 = vand.u32 2147483647, %v150
    %v920 = vand.u32 %v919, 8388607
    %v921 = vor.u32 %v920, 8388608
    %v922 = vsub.s32 0, %v921
    %v923 = vadd.s32 %v918, 1
    %vm924 = vcmp.gt.s32.totalorder %v923, 0
    %v925 = vsel %vm924, %v923, 0
    %v926 = vshrl.u32 %v925, 5
    %v927 = vand.u32 %v925, 31
    %v928 = vsub.s32 32, %v927
    %v929 = vshrl.u32 683565275, %v928
    %v930 = vshll.u32 683565275, %v927
    %v931 = vshrl.u32 2475754826, %v928
    %v932 = vor.u32 %v930, %v931
    %v933 = vshll.u32 2475754826, %v927
    %v934 = vshrl.u32 2131351028, %v928
    %v935 = vor.u32 %v933, %v934
    %v936 = vshll.u32 2131351028, %v927
    %v937 = vshrl.u32 2102212464, %v928
    %v938 = vor.u32 %v936, %v937
    %v939 = vshll.u32 2102212464, %v927
    %v940 = vshrl.u32 920167782, %v928
    %v941 = vor.u32 %v939, %v940
    %v942 = vshll.u32 920167782, %v927
    %v943 = vshrl.u32 1326507024, %v928
    %v944 = vor.u32 %v942, %v943
    %vm945 = vcmp.lt.s32.totalorder %v926, 1
    %vm946 = vcmp.lt.s32.totalorder %v926, 2
    %vm947 = vcmp.lt.s32.totalorder %v926, 3
    %vm948 = vcmp.lt.s32.totalorder %v926, 4
    %v949 = vsel %vm945, %v929, %v932
    %v950 = vsel %vm948, %v938, 2102212464
    %v951 = vsel %vm947, %v935, %v950
    %v952 = vsel %vm946, %v949, %v951
    %v953 = vsel %vm945, %v932, %v935
    %v954 = vsel %vm948, %v941, 920167782
    %v955 = vsel %vm947, %v938, %v954
    %v956 = vsel %vm946, %v953, %v955
    %v957 = vsel %vm945, %v935, %v938
    %v958 = vsel %vm948, %v944, 1326507024
    %v959 = vsel %vm947, %v941, %v958
    %v960 = vsel %vm946, %v957, %v959
    %v961 = vshll.u32 %v921, 8
    %v962 = vmul.u32.u64.compose %v961, %v960
    %v963 = vextract.low.u32 %v962
    %v964 = vextract.high.u32 %v962
    %v965 = vmul.u32.u64.compose %v961, %v956
    %v966 = vextract.low.u32 %v965
    %v967 = vextract.high.u32 %v965
    %v968 = vmul.u32 %v961, %v952
    %v969 = vadd.s32 %v964, %v966
    %vm970 = vc.u32 %v964, %v966
    %v971 = vadd.s32 %v967, 1
    %v972 = vsel %vm970, %v971, %v967
    %v973 = vadd.s32 %v968, %v972
    %v974 = vadd.s32 %v973, 536870912
    %v975 = vshrl.u32 %v974, 30
    %v976 = vshll.u32 %v975, 30
    %v977 = vsub.s32 %v973, %v976
    %vm978 = vcmp.lt.s32.totalorder %v977, 0
    %v979 = vsub.s32 0, %v977
    %v980 = vsel %vm978, %v979, %v977
    %v981 = vclz %v980
    %v982 = vsub.s32 %v981, 2
    %vm983 = vcmp.gt.s32.totalorder 0, %v982
    %v984 = vsel %vm983, 0, %v982
    %v985 = vsub.s32 32, %v984
    %v986 = vshll.u32 %v977, %v984
    %v987 = vshrl.u32 %v969, %v985
    %v988 = vor.u32 %v986, %v987
    %v989 = vsub.s32 4294967266, %v984
    %v990 = vadd.s32 %v989, 127
    %v991 = vshll.u32 %v990, 23
    %v992 = vor.u32 4788187, %v991
    %v993 = vand.u32 2147483647, %v992
    %v995 = vcvt.s32.f32 %v988
    %v996 = vmul.f32 %v995, %v993
    %v997 = vxor.u32 %v996, 2147483648
    %v998 = vsel %vm915, %v997, %v996
    %v999 = vsub.s32 4, %v975
    %v1000 = vsel %vm915, %v999, %v975
    %v1001 = vsel %vm914, %v150, %v998
    %v1002 = vsel %vm914, 0, %v1000
    %v1003 = vcosq.f32.pop %v1001
    %v1004 = vsinq.f32.pop %v1001
    %vm1005 = vweird.f32 %v150
    %v1006 = vadd.s32 %v1002, 3
    %v1007 = vand.u32 %v1006, 3
    %vm1008 = vcmp.lt.s32.totalorder %v1007, 2
    %vm1009 = vcmp.eq.s32.totalorder %v1007, 0
    %v1010 = vxor.u32 %v1004, 2147483648
    %v1011 = vsel %vm1009, %v1003, %v1010
    %vm1012 = vcmp.eq.s32.totalorder %v1007, 2
    %v1013 = vxor.u32 %v1003, 2147483648
    %v1014 = vsel %vm1012, %v1013, %v1004
    %v1015 = vsel %vm1008, %v1011, %v1014
    %v1016 = vsel %vm1005, nan, %v1015
    %v1017 = vand.u32 2147483647, %v155
    %vm1018 = vcmp.le.f32.partialorder %v1017, 0.7853982
    %vm1019 = vcmp.lt.s32.totalorder %v155, 0
    %v1020 = vand.u32 %v155, 2139095040
    %v1021 = vshrl.u32 %v1020, 23
    %v1022 = vsub.s32 %v1021, 127
    %v1023 = vand.u32 2147483647, %v155
    %v1024 = vand.u32 %v1023, 8388607
    %v1025 = vor.u32 %v1024, 8388608
    %v1026 = vsub.s32 0, %v1025
    %v1027 = vadd.s32 %v1022, 1
    %vm1028 = vcmp.gt.s32.totalorder %v1027, 0
    %v1029 = vsel %vm1028, %v1027, 0
    %v1030 = vshrl.u32 %v1029, 5
    %v1031 = vand.u32 %v1029, 31
    %v1032 = vsub.s32 32, %v1031
    %v1033 = vshrl.u32 683565275, %v1032
    %v1034 = vshll.u32 683565275, %v1031
    %v1035 = vshrl.u32 2475754826, %v1032
    %v1036 = vor.u32 %v1034, %v1035
    %v1037 = vshll.u32 2475754826, %v1031
    %v1038 = vshrl.u32 2131351028, %v1032
    %v1039 = vor.u32 %v1037, %v1038
    %v1040 = vshll.u32 2131351028, %v1031
    %v1041 = vshrl.u32 2102212464, %v1032
    %v1042 = vor.u32 %v1040, %v1041
    %v1043 = vshll.u32 2102212464, %v1031
    %v1044 = vshrl.u32 920167782, %v1032
    %v1045 = vor.u32 %v1043, %v1044
    %v1046 = vshll.u32 920167782, %v1031
    %v1047 = vshrl.u32 1326507024, %v1032
    %v1048 = vor.u32 %v1046, %v1047
    %vm1049 = vcmp.lt.s32.totalorder %v1030, 1
    %vm1050 = vcmp.lt.s32.totalorder %v1030, 2
    %vm1051 = vcmp.lt.s32.totalorder %v1030, 3
    %vm1052 = vcmp.lt.s32.totalorder %v1030, 4
    %v1053 = vsel %vm1049, %v1033, %v1036
    %v1054 = vsel %vm1052, %v1042, 2102212464
    %v1055 = vsel %vm1051, %v1039, %v1054
    %v1056 = vsel %vm1050, %v1053, %v1055
    %v1057 = vsel %vm1049, %v1036, %v1039
    %v1058 = vsel %vm1052, %v1045, 920167782
    %v1059 = vsel %vm1051, %v1042, %v1058
    %v1060 = vsel %vm1050, %v1057, %v1059
    %v1061 = vsel %vm1049, %v1039, %v1042
    %v1062 = vsel %vm1052, %v1048, 1326507024
    %v1063 = vsel %vm1051, %v1045, %v1062
    %v1064 = vsel %vm1050, %v1061, %v1063
    %v1065 = vshll.u32 %v1025, 8
    %v1066 = vmul.u32.u64.compose %v1065, %v1064
    %v1067 = vextract.low.u32 %v1066
    %v1068 = vextract.high.u32 %v1066
    %v1069 = vmul.u32.u64.compose %v1065, %v1060
    %v1070 = vextract.low.u32 %v1069
    %v1071 = vextract.high.u32 %v1069
    %v1072 = vmul.u32 %v1065, %v1056
    %v1073 = vadd.s32 %v1068, %v1070
    %vm1074 = vc.u32 %v1068, %v1070
    %v1075 = vadd.s32 %v1071, 1
    %v1076 = vsel %vm1074, %v1075, %v1071
    %v1077 = vadd.s32 %v1072, %v1076
    %v1078 = vadd.s32 %v1077, 536870912
    %v1079 = vshrl.u32 %v1078, 30
    %v1080 = vshll.u32 %v1079, 30
    %v1081 = vsub.s32 %v1077, %v1080
    %vm1082 = vcmp.lt.s32.totalorder %v1081, 0
    %v1083 = vsub.s32 0, %v1081
    %v1084 = vsel %vm1082, %v1083, %v1081
    %v1085 = vclz %v1084
    %v1086 = vsub.s32 %v1085, 2
    %vm1087 = vcmp.gt.s32.totalorder 0, %v1086
    %v1088 = vsel %vm1087, 0, %v1086
    %v1089 = vsub.s32 32, %v1088
    %v1090 = vshll.u32 %v1081, %v1088
    %v1091 = vshrl.u32 %v1073, %v1089
    %v1092 = vor.u32 %v1090, %v1091
    %v1093 = vsub.s32 4294967266, %v1088
    %v1094 = vadd.s32 %v1093, 127
    %v1095 = vshll.u32 %v1094, 23
    %v1096 = vor.u32 4788187, %v1095
    %v1097 = vand.u32 2147483647, %v1096
    %v1099 = vcvt.s32.f32 %v1092
    %v1100 = vmul.f32 %v1099, %v1097
    %v1101 = vxor.u32 %v1100, 2147483648
    %v1102 = vsel %vm1019, %v1101, %v1100
    %v1103 = vsub.s32 4, %v1079
    %v1104 = vsel %vm1019, %v1103, %v1079
    %v1105 = vsel %vm1018, %v155, %v1102
    %v1106 = vsel %vm1018, 0, %v1104
    %v1107 = vcosq.f32.pop %v1105
    %v1108 = vsinq.f32.pop %v1105
    %vm1109 = vweird.f32 %v155
    %v1110 = vadd.s32 %v1106, 3
    %v1111 = vand.u32 %v1110, 3
    %vm1112 = vcmp.lt.s32.totalorder %v1111, 2
    %vm1113 = vcmp.eq.s32.totalorder %v1111, 0
    %v1114 = vxor.u32 %v1108, 2147483648
    %v1115 = vsel %vm1113, %v1107, %v1114
    %vm1116 = vcmp.eq.s32.totalorder %v1111, 2
    %v1117 = vxor.u32 %v1107, 2147483648
    %v1118 = vsel %vm1116, %v1117, %v1108
    %v1119 = vsel %vm1112, %v1115, %v1118
    %v1120 = vsel %vm1109, nan, %v1119
    %v1121 = vand.u32 2147483647, %v158
    %vm1122 = vcmp.le.f32.partialorder %v1121, 0.7853982
    %vm1123 = vcmp.lt.s32.totalorder %v158, 0
    %v1124 = vand.u32 %v158, 2139095040
    %v1125 = vshrl.u32 %v1124, 23
    %v1126 = vsub.s32 %v1125, 127
    %v1127 = vand.u32 2147483647, %v158
    %v1128 = vand.u32 %v1127, 8388607
    %v1129 = vor.u32 %v1128, 8388608
    %v1130 = vsub.s32 0, %v1129
    %v1131 = vadd.s32 %v1126, 1
    %vm1132 = vcmp.gt.s32.totalorder %v1131, 0
    %v1133 = vsel %vm1132, %v1131, 0
    %v1134 = vshrl.u32 %v1133, 5
    %v1135 = vand.u32 %v1133, 31
    %v1136 = vsub.s32 32, %v1135
    %v1137 = vshrl.u32 683565275, %v1136
    %v1138 = vshll.u32 683565275, %v1135
    %v1139 = vshrl.u32 2475754826, %v1136
    %v1140 = vor.u32 %v1138, %v1139
    %v1141 = vshll.u32 2475754826, %v1135
    %v1142 = vshrl.u32 2131351028, %v1136
    %v1143 = vor.u32 %v1141, %v1142
    %v1144 = vshll.u32 2131351028, %v1135
    %v1145 = vshrl.u32 2102212464, %v1136
    %v1146 = vor.u32 %v1144, %v1145
    %v1147 = vshll.u32 2102212464, %v1135
    %v1148 = vshrl.u32 920167782, %v1136
    %v1149 = vor.u32 %v1147, %v1148
    %v1150 = vshll.u32 920167782, %v1135
    %v1151 = vshrl.u32 1326507024, %v1136
    %v1152 = vor.u32 %v1150, %v1151
    %vm1153 = vcmp.lt.s32.totalorder %v1134, 1
    %vm1154 = vcmp.lt.s32.totalorder %v1134, 2
    %vm1155 = vcmp.lt.s32.totalorder %v1134, 3
    %vm1156 = vcmp.lt.s32.totalorder %v1134, 4
    %v1157 = vsel %vm1153, %v1137, %v1140
    %v1158 = vsel %vm1156, %v1146, 2102212464
    %v1159 = vsel %vm1155, %v1143, %v1158
    %v1160 = vsel %vm1154, %v1157, %v1159
    %v1161 = vsel %vm1153, %v1140, %v1143
    %v1162 = vsel %vm1156, %v1149, 920167782
    %v1163 = vsel %vm1155, %v1146, %v1162
    %v1164 = vsel %vm1154, %v1161, %v1163
    %v1165 = vsel %vm1153, %v1143, %v1146
    %v1166 = vsel %vm1156, %v1152, 1326507024
    %v1167 = vsel %vm1155, %v1149, %v1166
    %v1168 = vsel %vm1154, %v1165, %v1167
    %v1169 = vshll.u32 %v1129, 8
    %v1170 = vmul.u32.u64.compose %v1169, %v1168
    %v1171 = vextract.low.u32 %v1170
    %v1172 = vextract.high.u32 %v1170
    %v1173 = vmul.u32.u64.compose %v1169, %v1164
    %v1174 = vextract.low.u32 %v1173
    %v1175 = vextract.high.u32 %v1173
    %v1176 = vmul.u32 %v1169, %v1160
    %v1177 = vadd.s32 %v1172, %v1174
    %vm1178 = vc.u32 %v1172, %v1174
    %v1179 = vadd.s32 %v1175, 1
    %v1180 = vsel %vm1178, %v1179, %v1175
    %v1181 = vadd.s32 %v1176, %v1180
    %v1182 = vadd.s32 %v1181, 536870912
    %v1183 = vshrl.u32 %v1182, 30
    %v1184 = vshll.u32 %v1183, 30
    %v1185 = vsub.s32 %v1181, %v1184
    %vm1186 = vcmp.lt.s32.totalorder %v1185, 0
    %v1187 = vsub.s32 0, %v1185
    %v1188 = vsel %vm1186, %v1187, %v1185
    %v1189 = vclz %v1188
    %v1190 = vsub.s32 %v1189, 2
    %vm1191 = vcmp.gt.s32.totalorder 0, %v1190
    %v1192 = vsel %vm1191, 0, %v1190
    %v1193 = vsub.s32 32, %v1192
    %v1194 = vshll.u32 %v1185, %v1192
    %v1195 = vshrl.u32 %v1177, %v1193
    %v1196 = vor.u32 %v1194, %v1195
    %v1197 = vsub.s32 4294967266, %v1192
    %v1198 = vadd.s32 %v1197, 127
    %v1199 = vshll.u32 %v1198, 23
    %v1200 = vor.u32 4788187, %v1199
    %v1201 = vand.u32 2147483647, %v1200
    %v1203 = vcvt.s32.f32 %v1196
    %v1204 = vmul.f32 %v1203, %v1201
    %v1205 = vxor.u32 %v1204, 2147483648
    %v1206 = vsel %vm1123, %v1205, %v1204
    %v1207 = vsub.s32 4, %v1183
    %v1208 = vsel %vm1123, %v1207, %v1183
    %v1209 = vsel %vm1122, %v158, %v1206
    %v1210 = vsel %vm1122, 0, %v1208
    %v1211 = vcosq.f32.pop %v1209
    %v1212 = vsinq.f32.pop %v1209
    %vm1213 = vweird.f32 %v158
    %v1214 = vadd.s32 %v1210, 3
    %v1215 = vand.u32 %v1214, 3
    %vm1216 = vcmp.lt.s32.totalorder %v1215, 2
    %vm1217 = vcmp.eq.s32.totalorder %v1215, 0
    %v1218 = vxor.u32 %v1212, 2147483648
    %v1219 = vsel %vm1217, %v1211, %v1218
    %vm1220 = vcmp.eq.s32.totalorder %v1215, 2
    %v1221 = vxor.u32 %v1211, 2147483648
    %v1222 = vsel %vm1220, %v1221, %v1212
    %v1223 = vsel %vm1216, %v1219, %v1222
    %v1224 = vsel %vm1213, nan, %v1223
    %v1225 = vand.u32 2147483647, %v163
    %vm1226 = vcmp.le.f32.partialorder %v1225, 0.7853982
    %vm1227 = vcmp.lt.s32.totalorder %v163, 0
    %v1228 = vand.u32 %v163, 2139095040
    %v1229 = vshrl.u32 %v1228, 23
    %v1230 = vsub.s32 %v1229, 127
    %v1231 = vand.u32 2147483647, %v163
    %v1232 = vand.u32 %v1231, 8388607
    %v1233 = vor.u32 %v1232, 8388608
    %v1234 = vsub.s32 0, %v1233
    %v1235 = vadd.s32 %v1230, 1
    %vm1236 = vcmp.gt.s32.totalorder %v1235, 0
    %v1237 = vsel %vm1236, %v1235, 0
    %v1238 = vshrl.u32 %v1237, 5
    %v1239 = vand.u32 %v1237, 31
    %v1240 = vsub.s32 32, %v1239
    %v1241 = vshrl.u32 683565275, %v1240
    %v1242 = vshll.u32 683565275, %v1239
    %v1243 = vshrl.u32 2475754826, %v1240
    %v1244 = vor.u32 %v1242, %v1243
    %v1245 = vshll.u32 2475754826, %v1239
    %v1246 = vshrl.u32 2131351028, %v1240
    %v1247 = vor.u32 %v1245, %v1246
    %v1248 = vshll.u32 2131351028, %v1239
    %v1249 = vshrl.u32 2102212464, %v1240
    %v1250 = vor.u32 %v1248, %v1249
    %v1251 = vshll.u32 2102212464, %v1239
    %v1252 = vshrl.u32 920167782, %v1240
    %v1253 = vor.u32 %v1251, %v1252
    %v1254 = vshll.u32 920167782, %v1239
    %v1255 = vshrl.u32 1326507024, %v1240
    %v1256 = vor.u32 %v1254, %v1255
    %vm1257 = vcmp.lt.s32.totalorder %v1238, 1
    %vm1258 = vcmp.lt.s32.totalorder %v1238, 2
    %vm1259 = vcmp.lt.s32.totalorder %v1238, 3
    %vm1260 = vcmp.lt.s32.totalorder %v1238, 4
    %v1261 = vsel %vm1257, %v1241, %v1244
    %v1262 = vsel %vm1260, %v1250, 2102212464
    %v1263 = vsel %vm1259, %v1247, %v1262
    %v1264 = vsel %vm1258, %v1261, %v1263
    %v1265 = vsel %vm1257, %v1244, %v1247
    %v1266 = vsel %vm1260, %v1253, 920167782
    %v1267 = vsel %vm1259, %v1250, %v1266
    %v1268 = vsel %vm1258, %v1265, %v1267
    %v1269 = vsel %vm1257, %v1247, %v1250
    %v1270 = vsel %vm1260, %v1256, 1326507024
    %v1271 = vsel %vm1259, %v1253, %v1270
    %v1272 = vsel %vm1258, %v1269, %v1271
    %v1273 = vshll.u32 %v1233, 8
    %v1274 = vmul.u32.u64.compose %v1273, %v1272
    %v1275 = vextract.low.u32 %v1274
    %v1276 = vextract.high.u32 %v1274
    %v1277 = vmul.u32.u64.compose %v1273, %v1268
    %v1278 = vextract.low.u32 %v1277
    %v1279 = vextract.high.u32 %v1277
    %v1280 = vmul.u32 %v1273, %v1264
    %v1281 = vadd.s32 %v1276, %v1278
    %vm1282 = vc.u32 %v1276, %v1278
    %v1283 = vadd.s32 %v1279, 1
    %v1284 = vsel %vm1282, %v1283, %v1279
    %v1285 = vadd.s32 %v1280, %v1284
    %v1286 = vadd.s32 %v1285, 536870912
    %v1287 = vshrl.u32 %v1286, 30
    %v1288 = vshll.u32 %v1287, 30
    %v1289 = vsub.s32 %v1285, %v1288
    %vm1290 = vcmp.lt.s32.totalorder %v1289, 0
    %v1291 = vsub.s32 0, %v1289
    %v1292 = vsel %vm1290, %v1291, %v1289
    %v1293 = vclz %v1292
    %v1294 = vsub.s32 %v1293, 2
    %vm1295 = vcmp.gt.s32.totalorder 0, %v1294
    %v1296 = vsel %vm1295, 0, %v1294
    %v1297 = vsub.s32 32, %v1296
    %v1298 = vshll.u32 %v1289, %v1296
    %v1299 = vshrl.u32 %v1281, %v1297
    %v1300 = vor.u32 %v1298, %v1299
    %v1301 = vsub.s32 4294967266, %v1296
    %v1302 = vadd.s32 %v1301, 127
    %v1303 = vshll.u32 %v1302, 23
    %v1304 = vor.u32 4788187, %v1303
    %v1305 = vand.u32 2147483647, %v1304
    %v1307 = vcvt.s32.f32 %v1300
    %v1308 = vmul.f32 %v1307, %v1305
    %v1309 = vxor.u32 %v1308, 2147483648
    %v1310 = vsel %vm1227, %v1309, %v1308
    %v1311 = vsub.s32 4, %v1287
    %v1312 = vsel %vm1227, %v1311, %v1287
    %v1313 = vsel %vm1226, %v163, %v1310
    %v1314 = vsel %vm1226, 0, %v1312
    %v1315 = vcosq.f32.pop %v1313
    %v1316 = vsinq.f32.pop %v1313
    %vm1317 = vweird.f32 %v163
    %v1318 = vadd.s32 %v1314, 3
    %v1319 = vand.u32 %v1318, 3
    %vm1320 = vcmp.lt.s32.totalorder %v1319, 2
    %vm1321 = vcmp.eq.s32.totalorder %v1319, 0
    %v1322 = vxor.u32 %v1316, 2147483648
    %v1323 = vsel %vm1321, %v1315, %v1322
    %vm1324 = vcmp.eq.s32.totalorder %v1319, 2
    %v1325 = vxor.u32 %v1315, 2147483648
    %v1326 = vsel %vm1324, %v1325, %v1316
    %v1327 = vsel %vm1320, %v1323, %v1326
    %v1328 = vsel %vm1317, nan, %v1327
    %v1329 = vand.u32 2147483647, %v166
    %vm1330 = vcmp.le.f32.partialorder %v1329, 0.7853982
    %vm1331 = vcmp.lt.s32.totalorder %v166, 0
    %v1332 = vand.u32 %v166, 2139095040
    %v1333 = vshrl.u32 %v1332, 23
    %v1334 = vsub.s32 %v1333, 127
    %v1335 = vand.u32 2147483647, %v166
    %v1336 = vand.u32 %v1335, 8388607
    %v1337 = vor.u32 %v1336, 8388608
    %v1338 = vsub.s32 0, %v1337
    %v1339 = vadd.s32 %v1334, 1
    %vm1340 = vcmp.gt.s32.totalorder %v1339, 0
    %v1341 = vsel %vm1340, %v1339, 0
    %v1342 = vshrl.u32 %v1341, 5
    %v1343 = vand.u32 %v1341, 31
    %v1344 = vsub.s32 32, %v1343
    %v1345 = vshrl.u32 683565275, %v1344
    %v1346 = vshll.u32 683565275, %v1343
    %v1347 = vshrl.u32 2475754826, %v1344
    %v1348 = vor.u32 %v1346, %v1347
    %v1349 = vshll.u32 2475754826, %v1343
    %v1350 = vshrl.u32 2131351028, %v1344
    %v1351 = vor.u32 %v1349, %v1350
    %v1352 = vshll.u32 2131351028, %v1343
    %v1353 = vshrl.u32 2102212464, %v1344
    %v1354 = vor.u32 %v1352, %v1353
    %v1355 = vshll.u32 2102212464, %v1343
    %v1356 = vshrl.u32 920167782, %v1344
    %v1357 = vor.u32 %v1355, %v1356
    %v1358 = vshll.u32 920167782, %v1343
    %v1359 = vshrl.u32 1326507024, %v1344
    %v1360 = vor.u32 %v1358, %v1359
    %vm1361 = vcmp.lt.s32.totalorder %v1342, 1
    %vm1362 = vcmp.lt.s32.totalorder %v1342, 2
    %vm1363 = vcmp.lt.s32.totalorder %v1342, 3
    %vm1364 = vcmp.lt.s32.totalorder %v1342, 4
    %v1365 = vsel %vm1361, %v1345, %v1348
    %v1366 = vsel %vm1364, %v1354, 2102212464
    %v1367 = vsel %vm1363, %v1351, %v1366
    %v1368 = vsel %vm1362, %v1365, %v1367
    %v1369 = vsel %vm1361, %v1348, %v1351
    %v1370 = vsel %vm1364, %v1357, 920167782
    %v1371 = vsel %vm1363, %v1354, %v1370
    %v1372 = vsel %vm1362, %v1369, %v1371
    %v1373 = vsel %vm1361, %v1351, %v1354
    %v1374 = vsel %vm1364, %v1360, 1326507024
    %v1375 = vsel %vm1363, %v1357, %v1374
    %v1376 = vsel %vm1362, %v1373, %v1375
    %v1377 = vshll.u32 %v1337, 8
    %v1378 = vmul.u32.u64.compose %v1377, %v1376
    %v1379 = vextract.low.u32 %v1378
    %v1380 = vextract.high.u32 %v1378
    %v1381 = vmul.u32.u64.compose %v1377, %v1372
    %v1382 = vextract.low.u32 %v1381
    %v1383 = vextract.high.u32 %v1381
    %v1384 = vmul.u32 %v1377, %v1368
    %v1385 = vadd.s32 %v1380, %v1382
    %vm1386 = vc.u32 %v1380, %v1382
    %v1387 = vadd.s32 %v1383, 1
    %v1388 = vsel %vm1386, %v1387, %v1383
    %v1389 = vadd.s32 %v1384, %v1388
    %v1390 = vadd.s32 %v1389, 536870912
    %v1391 = vshrl.u32 %v1390, 30
    %v1392 = vshll.u32 %v1391, 30
    %v1393 = vsub.s32 %v1389, %v1392
    %vm1394 = vcmp.lt.s32.totalorder %v1393, 0
    %v1395 = vsub.s32 0, %v1393
    %v1396 = vsel %vm1394, %v1395, %v1393
    %v1397 = vclz %v1396
    %v1398 = vsub.s32 %v1397, 2
    %vm1399 = vcmp.gt.s32.totalorder 0, %v1398
    %v1400 = vsel %vm1399, 0, %v1398
    %v1401 = vsub.s32 32, %v1400
    %v1402 = vshll.u32 %v1393, %v1400
    %v1403 = vshrl.u32 %v1385, %v1401
    %v1404 = vor.u32 %v1402, %v1403
    %v1405 = vsub.s32 4294967266, %v1400
    %v1406 = vadd.s32 %v1405, 127
    %v1407 = vshll.u32 %v1406, 23
    %v1408 = vor.u32 4788187, %v1407
    %v1409 = vand.u32 2147483647, %v1408
    %v1411 = vcvt.s32.f32 %v1404
    %v1412 = vmul.f32 %v1411, %v1409
    %v1413 = vxor.u32 %v1412, 2147483648
    %v1414 = vsel %vm1331, %v1413, %v1412
    %v1415 = vsub.s32 4, %v1391
    %v1416 = vsel %vm1331, %v1415, %v1391
    %v1417 = vsel %vm1330, %v166, %v1414
    %v1418 = vsel %vm1330, 0, %v1416
    %v1419 = vcosq.f32.pop %v1417
    %v1420 = vsinq.f32.pop %v1417
    %vm1421 = vweird.f32 %v166
    %v1422 = vadd.s32 %v1418, 3
    %v1423 = vand.u32 %v1422, 3
    %vm1424 = vcmp.lt.s32.totalorder %v1423, 2
    %vm1425 = vcmp.eq.s32.totalorder %v1423, 0
    %v1426 = vxor.u32 %v1420, 2147483648
    %v1427 = vsel %vm1425, %v1419, %v1426
    %vm1428 = vcmp.eq.s32.totalorder %v1423, 2
    %v1429 = vxor.u32 %v1419, 2147483648
    %v1430 = vsel %vm1428, %v1429, %v1420
    %v1431 = vsel %vm1424, %v1427, %v1430
    %v1432 = vsel %vm1421, nan, %v1431
    %v1433 = vand.u32 2147483647, %v171
    %vm1434 = vcmp.le.f32.partialorder %v1433, 0.7853982
    %vm1435 = vcmp.lt.s32.totalorder %v171, 0
    %v1436 = vand.u32 %v171, 2139095040
    %v1437 = vshrl.u32 %v1436, 23
    %v1438 = vsub.s32 %v1437, 127
    %v1439 = vand.u32 2147483647, %v171
    %v1440 = vand.u32 %v1439, 8388607
    %v1441 = vor.u32 %v1440, 8388608
    %v1442 = vsub.s32 0, %v1441
    %v1443 = vadd.s32 %v1438, 1
    %vm1444 = vcmp.gt.s32.totalorder %v1443, 0
    %v1445 = vsel %vm1444, %v1443, 0
    %v1446 = vshrl.u32 %v1445, 5
    %v1447 = vand.u32 %v1445, 31
    %v1448 = vsub.s32 32, %v1447
    %v1449 = vshrl.u32 683565275, %v1448
    %v1450 = vshll.u32 683565275, %v1447
    %v1451 = vshrl.u32 2475754826, %v1448
    %v1452 = vor.u32 %v1450, %v1451
    %v1453 = vshll.u32 2475754826, %v1447
    %v1454 = vshrl.u32 2131351028, %v1448
    %v1455 = vor.u32 %v1453, %v1454
    %v1456 = vshll.u32 2131351028, %v1447
    %v1457 = vshrl.u32 2102212464, %v1448
    %v1458 = vor.u32 %v1456, %v1457
    %v1459 = vshll.u32 2102212464, %v1447
    %v1460 = vshrl.u32 920167782, %v1448
    %v1461 = vor.u32 %v1459, %v1460
    %v1462 = vshll.u32 920167782, %v1447
    %v1463 = vshrl.u32 1326507024, %v1448
    %v1464 = vor.u32 %v1462, %v1463
    %vm1465 = vcmp.lt.s32.totalorder %v1446, 1
    %vm1466 = vcmp.lt.s32.totalorder %v1446, 2
    %vm1467 = vcmp.lt.s32.totalorder %v1446, 3
    %vm1468 = vcmp.lt.s32.totalorder %v1446, 4
    %v1469 = vsel %vm1465, %v1449, %v1452
    %v1470 = vsel %vm1468, %v1458, 2102212464
    %v1471 = vsel %vm1467, %v1455, %v1470
    %v1472 = vsel %vm1466, %v1469, %v1471
    %v1473 = vsel %vm1465, %v1452, %v1455
    %v1474 = vsel %vm1468, %v1461, 920167782
    %v1475 = vsel %vm1467, %v1458, %v1474
    %v1476 = vsel %vm1466, %v1473, %v1475
    %v1477 = vsel %vm1465, %v1455, %v1458
    %v1478 = vsel %vm1468, %v1464, 1326507024
    %v1479 = vsel %vm1467, %v1461, %v1478
    %v1480 = vsel %vm1466, %v1477, %v1479
    %v1481 = vshll.u32 %v1441, 8
    %v1482 = vmul.u32.u64.compose %v1481, %v1480
    %v1483 = vextract.low.u32 %v1482
    %v1484 = vextract.high.u32 %v1482
    %v1485 = vmul.u32.u64.compose %v1481, %v1476
    %v1486 = vextract.low.u32 %v1485
    %v1487 = vextract.high.u32 %v1485
    %v1488 = vmul.u32 %v1481, %v1472
    %v1489 = vadd.s32 %v1484, %v1486
    %vm1490 = vc.u32 %v1484, %v1486
    %v1491 = vadd.s32 %v1487, 1
    %v1492 = vsel %vm1490, %v1491, %v1487
    %v1493 = vadd.s32 %v1488, %v1492
    %v1494 = vadd.s32 %v1493, 536870912
    %v1495 = vshrl.u32 %v1494, 30
    %v1496 = vshll.u32 %v1495, 30
    %v1497 = vsub.s32 %v1493, %v1496
    %vm1498 = vcmp.lt.s32.totalorder %v1497, 0
    %v1499 = vsub.s32 0, %v1497
    %v1500 = vsel %vm1498, %v1499, %v1497
    %v1501 = vclz %v1500
    %v1502 = vsub.s32 %v1501, 2
    %vm1503 = vcmp.gt.s32.totalorder 0, %v1502
    %v1504 = vsel %vm1503, 0, %v1502
    %v1505 = vsub.s32 32, %v1504
    %v1506 = vshll.u32 %v1497, %v1504
    %v1507 = vshrl.u32 %v1489, %v1505
    %v1508 = vor.u32 %v1506, %v1507
    %v1509 = vsub.s32 4294967266, %v1504
    %v1510 = vadd.s32 %v1509, 127
    %v1511 = vshll.u32 %v1510, 23
    %v1512 = vor.u32 4788187, %v1511
    %v1513 = vand.u32 2147483647, %v1512
    %v1515 = vcvt.s32.f32 %v1508
    %v1516 = vmul.f32 %v1515, %v1513
    %v1517 = vxor.u32 %v1516, 2147483648
    %v1518 = vsel %vm1435, %v1517, %v1516
    %v1519 = vsub.s32 4, %v1495
    %v1520 = vsel %vm1435, %v1519, %v1495
    %v1521 = vsel %vm1434, %v171, %v1518
    %v1522 = vsel %vm1434, 0, %v1520
    %v1523 = vcosq.f32.pop %v1521
    %v1524 = vsinq.f32.pop %v1521
    %vm1525 = vweird.f32 %v171
    %v1526 = vadd.s32 %v1522, 3
    %v1527 = vand.u32 %v1526, 3
    %vm1528 = vcmp.lt.s32.totalorder %v1527, 2
    %vm1529 = vcmp.eq.s32.totalorder %v1527, 0
    %v1530 = vxor.u32 %v1524, 2147483648
    %v1531 = vsel %vm1529, %v1523, %v1530
    %vm1532 = vcmp.eq.s32.totalorder %v1527, 2
    %v1533 = vxor.u32 %v1523, 2147483648
    %v1534 = vsel %vm1532, %v1533, %v1524
    %v1535 = vsel %vm1528, %v1531, %v1534
    %v1536 = vsel %vm1525, nan, %v1535
    %v1537 = vand.u32 2147483647, %v174
    %vm1538 = vcmp.le.f32.partialorder %v1537, 0.7853982
    %vm1539 = vcmp.lt.s32.totalorder %v174, 0
    %v1540 = vand.u32 %v174, 2139095040
    %v1541 = vshrl.u32 %v1540, 23
    %v1542 = vsub.s32 %v1541, 127
    %v1543 = vand.u32 2147483647, %v174
    %v1544 = vand.u32 %v1543, 8388607
    %v1545 = vor.u32 %v1544, 8388608
    %v1546 = vsub.s32 0, %v1545
    %v1547 = vadd.s32 %v1542, 1
    %vm1548 = vcmp.gt.s32.totalorder %v1547, 0
    %v1549 = vsel %vm1548, %v1547, 0
    %v1550 = vshrl.u32 %v1549, 5
    %v1551 = vand.u32 %v1549, 31
    %v1552 = vsub.s32 32, %v1551
    %v1553 = vshrl.u32 683565275, %v1552
    %v1554 = vshll.u32 683565275, %v1551
    %v1555 = vshrl.u32 2475754826, %v1552
    %v1556 = vor.u32 %v1554, %v1555
    %v1557 = vshll.u32 2475754826, %v1551
    %v1558 = vshrl.u32 2131351028, %v1552
    %v1559 = vor.u32 %v1557, %v1558
    %v1560 = vshll.u32 2131351028, %v1551
    %v1561 = vshrl.u32 2102212464, %v1552
    %v1562 = vor.u32 %v1560, %v1561
    %v1563 = vshll.u32 2102212464, %v1551
    %v1564 = vshrl.u32 920167782, %v1552
    %v1565 = vor.u32 %v1563, %v1564
    %v1566 = vshll.u32 920167782, %v1551
    %v1567 = vshrl.u32 1326507024, %v1552
    %v1568 = vor.u32 %v1566, %v1567
    %vm1569 = vcmp.lt.s32.totalorder %v1550, 1
    %vm1570 = vcmp.lt.s32.totalorder %v1550, 2
    %vm1571 = vcmp.lt.s32.totalorder %v1550, 3
    %vm1572 = vcmp.lt.s32.totalorder %v1550, 4
    %v1573 = vsel %vm1569, %v1553, %v1556
    %v1574 = vsel %vm1572, %v1562, 2102212464
    %v1575 = vsel %vm1571, %v1559, %v1574
    %v1576 = vsel %vm1570, %v1573, %v1575
    %v1577 = vsel %vm1569, %v1556, %v1559
    %v1578 = vsel %vm1572, %v1565, 920167782
    %v1579 = vsel %vm1571, %v1562, %v1578
    %v1580 = vsel %vm1570, %v1577, %v1579
    %v1581 = vsel %vm1569, %v1559, %v1562
    %v1582 = vsel %vm1572, %v1568, 1326507024
    %v1583 = vsel %vm1571, %v1565, %v1582
    %v1584 = vsel %vm1570, %v1581, %v1583
    %v1585 = vshll.u32 %v1545, 8
    %v1586 = vmul.u32.u64.compose %v1585, %v1584
    %v1587 = vextract.low.u32 %v1586
    %v1588 = vextract.high.u32 %v1586
    %v1589 = vmul.u32.u64.compose %v1585, %v1580
    %v1590 = vextract.low.u32 %v1589
    %v1591 = vextract.high.u32 %v1589
    %v1592 = vmul.u32 %v1585, %v1576
    %v1593 = vadd.s32 %v1588, %v1590
    %vm1594 = vc.u32 %v1588, %v1590
    %v1595 = vadd.s32 %v1591, 1
    %v1596 = vsel %vm1594, %v1595, %v1591
    %v1597 = vadd.s32 %v1592, %v1596
    %v1598 = vadd.s32 %v1597, 536870912
    %v1599 = vshrl.u32 %v1598, 30
    %v1600 = vshll.u32 %v1599, 30
    %v1601 = vsub.s32 %v1597, %v1600
    %vm1602 = vcmp.lt.s32.totalorder %v1601, 0
    %v1603 = vsub.s32 0, %v1601
    %v1604 = vsel %vm1602, %v1603, %v1601
    %v1605 = vclz %v1604
    %v1606 = vsub.s32 %v1605, 2
    %vm1607 = vcmp.gt.s32.totalorder 0, %v1606
    %v1608 = vsel %vm1607, 0, %v1606
    %v1609 = vsub.s32 32, %v1608
    %v1610 = vshll.u32 %v1601, %v1608
    %v1611 = vshrl.u32 %v1593, %v1609
    %v1612 = vor.u32 %v1610, %v1611
    %v1613 = vsub.s32 4294967266, %v1608
    %v1614 = vadd.s32 %v1613, 127
    %v1615 = vshll.u32 %v1614, 23
    %v1616 = vor.u32 4788187, %v1615
    %v1617 = vand.u32 2147483647, %v1616
    %v1619 = vcvt.s32.f32 %v1612
    %v1620 = vmul.f32 %v1619, %v1617
    %v1621 = vxor.u32 %v1620, 2147483648
    %v1622 = vsel %vm1539, %v1621, %v1620
    %v1623 = vsub.s32 4, %v1599
    %v1624 = vsel %vm1539, %v1623, %v1599
    %v1625 = vsel %vm1538, %v174, %v1622
    %v1626 = vsel %vm1538, 0, %v1624
    %v1627 = vcosq.f32.pop %v1625
    %v1628 = vsinq.f32.pop %v1625
    %vm1629 = vweird.f32 %v174
    %v1630 = vadd.s32 %v1626, 3
    %v1631 = vand.u32 %v1630, 3
    %vm1632 = vcmp.lt.s32.totalorder %v1631, 2
    %vm1633 = vcmp.eq.s32.totalorder %v1631, 0
    %v1634 = vxor.u32 %v1628, 2147483648
    %v1635 = vsel %vm1633, %v1627, %v1634
    %vm1636 = vcmp.eq.s32.totalorder %v1631, 2
    %v1637 = vxor.u32 %v1627, 2147483648
    %v1638 = vsel %vm1636, %v1637, %v1628
    %v1639 = vsel %vm1632, %v1635, %v1638
    %v1640 = vsel %vm1629, nan, %v1639
    %v1641 = vand.u32 2147483647, %v179
    %vm1642 = vcmp.le.f32.partialorder %v1641, 0.7853982
    %vm1643 = vcmp.lt.s32.totalorder %v179, 0
    %v1644 = vand.u32 %v179, 2139095040
    %v1645 = vshrl.u32 %v1644, 23
    %v1646 = vsub.s32 %v1645, 127
    %v1647 = vand.u32 2147483647, %v179
    %v1648 = vand.u32 %v1647, 8388607
    %v1649 = vor.u32 %v1648, 8388608
    %v1650 = vsub.s32 0, %v1649
    %v1651 = vadd.s32 %v1646, 1
    %vm1652 = vcmp.gt.s32.totalorder %v1651, 0
    %v1653 = vsel %vm1652, %v1651, 0
    %v1654 = vshrl.u32 %v1653, 5
    %v1655 = vand.u32 %v1653, 31
    %v1656 = vsub.s32 32, %v1655
    %v1657 = vshrl.u32 683565275, %v1656
    %v1658 = vshll.u32 683565275, %v1655
    %v1659 = vshrl.u32 2475754826, %v1656
    %v1660 = vor.u32 %v1658, %v1659
    %v1661 = vshll.u32 2475754826, %v1655
    %v1662 = vshrl.u32 2131351028, %v1656
    %v1663 = vor.u32 %v1661, %v1662
    %v1664 = vshll.u32 2131351028, %v1655
    %v1665 = vshrl.u32 2102212464, %v1656
    %v1666 = vor.u32 %v1664, %v1665
    %v1667 = vshll.u32 2102212464, %v1655
    %v1668 = vshrl.u32 920167782, %v1656
    %v1669 = vor.u32 %v1667, %v1668
    %v1670 = vshll.u32 920167782, %v1655
    %v1671 = vshrl.u32 1326507024, %v1656
    %v1672 = vor.u32 %v1670, %v1671
    %vm1673 = vcmp.lt.s32.totalorder %v1654, 1
    %vm1674 = vcmp.lt.s32.totalorder %v1654, 2
    %vm1675 = vcmp.lt.s32.totalorder %v1654, 3
    %vm1676 = vcmp.lt.s32.totalorder %v1654, 4
    %v1677 = vsel %vm1673, %v1657, %v1660
    %v1678 = vsel %vm1676, %v1666, 2102212464
    %v1679 = vsel %vm1675, %v1663, %v1678
    %v1680 = vsel %vm1674, %v1677, %v1679
    %v1681 = vsel %vm1673, %v1660, %v1663
    %v1682 = vsel %vm1676, %v1669, 920167782
    %v1683 = vsel %vm1675, %v1666, %v1682
    %v1684 = vsel %vm1674, %v1681, %v1683
    %v1685 = vsel %vm1673, %v1663, %v1666
    %v1686 = vsel %vm1676, %v1672, 1326507024
    %v1687 = vsel %vm1675, %v1669, %v1686
    %v1688 = vsel %vm1674, %v1685, %v1687
    %v1689 = vshll.u32 %v1649, 8
    %v1690 = vmul.u32.u64.compose %v1689, %v1688
    %v1691 = vextract.low.u32 %v1690
    %v1692 = vextract.high.u32 %v1690
    %v1693 = vmul.u32.u64.compose %v1689, %v1684
    %v1694 = vextract.low.u32 %v1693
    %v1695 = vextract.high.u32 %v1693
    %v1696 = vmul.u32 %v1689, %v1680
    %v1697 = vadd.s32 %v1692, %v1694
    %vm1698 = vc.u32 %v1692, %v1694
    %v1699 = vadd.s32 %v1695, 1
    %v1700 = vsel %vm1698, %v1699, %v1695
    %v1701 = vadd.s32 %v1696, %v1700
    %v1702 = vadd.s32 %v1701, 536870912
    %v1703 = vshrl.u32 %v1702, 30
    %v1704 = vshll.u32 %v1703, 30
    %v1705 = vsub.s32 %v1701, %v1704
    %vm1706 = vcmp.lt.s32.totalorder %v1705, 0
    %v1707 = vsub.s32 0, %v1705
    %v1708 = vsel %vm1706, %v1707, %v1705
    %v1709 = vclz %v1708
    %v1710 = vsub.s32 %v1709, 2
    %vm1711 = vcmp.gt.s32.totalorder 0, %v1710
    %v1712 = vsel %vm1711, 0, %v1710
    %v1713 = vsub.s32 32, %v1712
    %v1714 = vshll.u32 %v1705, %v1712
    %v1715 = vshrl.u32 %v1697, %v1713
    %v1716 = vor.u32 %v1714, %v1715
    %v1717 = vsub.s32 4294967266, %v1712
    %v1718 = vadd.s32 %v1717, 127
    %v1719 = vshll.u32 %v1718, 23
    %v1720 = vor.u32 4788187, %v1719
    %v1721 = vand.u32 2147483647, %v1720
    %v1723 = vcvt.s32.f32 %v1716
    %v1724 = vmul.f32 %v1723, %v1721
    %v1725 = vxor.u32 %v1724, 2147483648
    %v1726 = vsel %vm1643, %v1725, %v1724
    %v1727 = vsub.s32 4, %v1703
    %v1728 = vsel %vm1643, %v1727, %v1703
    %v1729 = vsel %vm1642, %v179, %v1726
    %v1730 = vsel %vm1642, 0, %v1728
    %v1731 = vcosq.f32.pop %v1729
    %v1732 = vsinq.f32.pop %v1729
    %vm1733 = vweird.f32 %v179
    %v1734 = vadd.s32 %v1730, 3
    %v1735 = vand.u32 %v1734, 3
    %vm1736 = vcmp.lt.s32.totalorder %v1735, 2
    %vm1737 = vcmp.eq.s32.totalorder %v1735, 0
    %v1738 = vxor.u32 %v1732, 2147483648
    %v1739 = vsel %vm1737, %v1731, %v1738
    %vm1740 = vcmp.eq.s32.totalorder %v1735, 2
    %v1741 = vxor.u32 %v1731, 2147483648
    %v1742 = vsel %vm1740, %v1741, %v1732
    %v1743 = vsel %vm1736, %v1739, %v1742
    %v1744 = vsel %vm1733, nan, %v1743
    %v1745 = vand.u32 2147483647, %v182
    %vm1746 = vcmp.le.f32.partialorder %v1745, 0.7853982
    %vm1747 = vcmp.lt.s32.totalorder %v182, 0
    %v1748 = vand.u32 %v182, 2139095040
    %v1749 = vshrl.u32 %v1748, 23
    %v1750 = vsub.s32 %v1749, 127
    %v1751 = vand.u32 2147483647, %v182
    %v1752 = vand.u32 %v1751, 8388607
    %v1753 = vor.u32 %v1752, 8388608
    %v1754 = vsub.s32 0, %v1753
    %v1755 = vadd.s32 %v1750, 1
    %vm1756 = vcmp.gt.s32.totalorder %v1755, 0
    %v1757 = vsel %vm1756, %v1755, 0
    %v1758 = vshrl.u32 %v1757, 5
    %v1759 = vand.u32 %v1757, 31
    %v1760 = vsub.s32 32, %v1759
    %v1761 = vshrl.u32 683565275, %v1760
    %v1762 = vshll.u32 683565275, %v1759
    %v1763 = vshrl.u32 2475754826, %v1760
    %v1764 = vor.u32 %v1762, %v1763
    %v1765 = vshll.u32 2475754826, %v1759
    %v1766 = vshrl.u32 2131351028, %v1760
    %v1767 = vor.u32 %v1765, %v1766
    %v1768 = vshll.u32 2131351028, %v1759
    %v1769 = vshrl.u32 2102212464, %v1760
    %v1770 = vor.u32 %v1768, %v1769
    %v1771 = vshll.u32 2102212464, %v1759
    %v1772 = vshrl.u32 920167782, %v1760
    %v1773 = vor.u32 %v1771, %v1772
    %v1774 = vshll.u32 920167782, %v1759
    %v1775 = vshrl.u32 1326507024, %v1760
    %v1776 = vor.u32 %v1774, %v1775
    %vm1777 = vcmp.lt.s32.totalorder %v1758, 1
    %vm1778 = vcmp.lt.s32.totalorder %v1758, 2
    %vm1779 = vcmp.lt.s32.totalorder %v1758, 3
    %vm1780 = vcmp.lt.s32.totalorder %v1758, 4
    %v1781 = vsel %vm1777, %v1761, %v1764
    %v1782 = vsel %vm1780, %v1770, 2102212464
    %v1783 = vsel %vm1779, %v1767, %v1782
    %v1784 = vsel %vm1778, %v1781, %v1783
    %v1785 = vsel %vm1777, %v1764, %v1767
    %v1786 = vsel %vm1780, %v1773, 920167782
    %v1787 = vsel %vm1779, %v1770, %v1786
    %v1788 = vsel %vm1778, %v1785, %v1787
    %v1789 = vsel %vm1777, %v1767, %v1770
    %v1790 = vsel %vm1780, %v1776, 1326507024
    %v1791 = vsel %vm1779, %v1773, %v1790
    %v1792 = vsel %vm1778, %v1789, %v1791
    %v1793 = vshll.u32 %v1753, 8
    %v1794 = vmul.u32.u64.compose %v1793, %v1792
    %v1795 = vextract.low.u32 %v1794
    %v1796 = vextract.high.u32 %v1794
    %v1797 = vmul.u32.u64.compose %v1793, %v1788
    %v1798 = vextract.low.u32 %v1797
    %v1799 = vextract.high.u32 %v1797
    %v1800 = vmul.u32 %v1793, %v1784
    %v1801 = vadd.s32 %v1796, %v1798
    %vm1802 = vc.u32 %v1796, %v1798
    %v1803 = vadd.s32 %v1799, 1
    %v1804 = vsel %vm1802, %v1803, %v1799
    %v1805 = vadd.s32 %v1800, %v1804
    %v1806 = vadd.s32 %v1805, 536870912
    %v1807 = vshrl.u32 %v1806, 30
    %v1808 = vshll.u32 %v1807, 30
    %v1809 = vsub.s32 %v1805, %v1808
    %vm1810 = vcmp.lt.s32.totalorder %v1809, 0
    %v1811 = vsub.s32 0, %v1809
    %v1812 = vsel %vm1810, %v1811, %v1809
    %v1813 = vclz %v1812
    %v1814 = vsub.s32 %v1813, 2
    %vm1815 = vcmp.gt.s32.totalorder 0, %v1814
    %v1816 = vsel %vm1815, 0, %v1814
    %v1817 = vsub.s32 32, %v1816
    %v1818 = vshll.u32 %v1809, %v1816
    %v1819 = vshrl.u32 %v1801, %v1817
    %v1820 = vor.u32 %v1818, %v1819
    %v1821 = vsub.s32 4294967266, %v1816
    %v1822 = vadd.s32 %v1821, 127
    %v1823 = vshll.u32 %v1822, 23
    %v1824 = vor.u32 4788187, %v1823
    %v1825 = vand.u32 2147483647, %v1824
    %v1827 = vcvt.s32.f32 %v1820
    %v1828 = vmul.f32 %v1827, %v1825
    %v1829 = vxor.u32 %v1828, 2147483648
    %v1830 = vsel %vm1747, %v1829, %v1828
    %v1831 = vsub.s32 4, %v1807
    %v1832 = vsel %vm1747, %v1831, %v1807
    %v1833 = vsel %vm1746, %v182, %v1830
    %v1834 = vsel %vm1746, 0, %v1832
    %v1835 = vcosq.f32.pop %v1833
    %v1836 = vsinq.f32.pop %v1833
    %vm1837 = vweird.f32 %v182
    %v1838 = vadd.s32 %v1834, 3
    %v1839 = vand.u32 %v1838, 3
    %vm1840 = vcmp.lt.s32.totalorder %v1839, 2
    %vm1841 = vcmp.eq.s32.totalorder %v1839, 0
    %v1842 = vxor.u32 %v1836, 2147483648
    %v1843 = vsel %vm1841, %v1835, %v1842
    %vm1844 = vcmp.eq.s32.totalorder %v1839, 2
    %v1845 = vxor.u32 %v1835, 2147483648
    %v1846 = vsel %vm1844, %v1845, %v1836
    %v1847 = vsel %vm1840, %v1843, %v1846
    %v1848 = vsel %vm1837, nan, %v1847
    %1849 = vst [vmem:[#allocation2] sm:$0xff] %v288
    %1850 = vst [vmem:[#allocation2 + $0x8] sm:$0xff] %v392
    %1851 = vst [vmem:[#allocation2 + $0x10] sm:$0xff] %v496
    %1852 = vst [vmem:[#allocation2 + $0x18] sm:$0xff] %v600
    %1853 = vst [vmem:[#allocation2 + $0x20] sm:$0xff] %v704
    %1854 = vst [vmem:[#allocation2 + $0x28] sm:$0xff] %v808
    %1855 = vst [vmem:[#allocation2 + $0x30] sm:$0xff] %v912
    %1856 = vst [vmem:[#allocation2 + $0x38] sm:$0xff] %v1016
    %1857 = vst [vmem:[#allocation2 + $0x40] sm:$0xff] %v1120
    %1858 = vst [vmem:[#allocation2 + $0x48] sm:$0xff] %v1224
    %1859 = vst [vmem:[#allocation2 + $0x50] sm:$0xff] %v1328
    %1860 = vst [vmem:[#allocation2 + $0x58] sm:$0xff] %v1432
    %1861 = vst [vmem:[#allocation2 + $0x60] sm:$0xff] %v1536
    %1862 = vst [vmem:[#allocation2 + $0x68] sm:$0xff] %v1640
    %1863 = vst [vmem:[#allocation2 + $0x70] sm:$0xff] %v1744
    %1864 = vst [vmem:[#allocation2 + $0x78] sm:$0xff] %v1848
    // Predicated region
    $region14: #{tpu_custom_call.1} parent=1 // pred_check
      _
    $region15: #{tpu_custom_call.1} parent=1 // pred_check_branch
      %1866 = sbr.rel (0) target = $region17
    $region16: #{tpu_custom_call.1} parent=1 // pred_region
      %s1868 = ssub.s32 2048, 2048
      %1869 = vsyncadd [#allocation3], %s1868
      %s1870 = sshll.u32 [#allocation2], 4
      %s1871 = int_to_ptr.vmem [resolvable:$true] %s1870
      %1876 = dma.vmem_to_hbm [thread:$0]  %s1871, 2048, %s3, [#allocation3], 128, 128, 8
    $region17: #{tpu_custom_call.1} parent=1 // pred_fallthru
      _
    // Predicated region
    $region18: #{tpu_custom_call.1} parent=1 // pred_check
      _
    $region19: #{tpu_custom_call.1} parent=1 // pred_check_branch
      %1878 = sbr.rel (0) target = $region21
    $region20: #{tpu_custom_call.1} parent=1 // pred_region
      %1879 = dma.done [#allocation3], 2048
    $region21: #{tpu_custom_call.1} parent=1 // pred_fallthru
      _
    %1880 = vsyncpa [#allocation3], 1

</llo_original>
